<compile_context>
chip_gen: v6e
topology: v6e:2x2x1
jax: 0.10.0
libtpu: 0.0.40
codegen_flags: <defaults>
</compile_context>

<pallas_src>
from typing import List

import numpy as np
import jax
import jax.numpy as jnp
from jax.experimental import pallas as pl
from jax.experimental.pallas import tpu as pltpu


# ----------------------------------------------------------------------------
# Fused kernel: synthetic encoder layer (CLS-only) + classification heads
# ----------------------------------------------------------------------------
def icd_fused_kernel(x_ref, mask_ref,
                     wq_ref, bq_ref, wk_ref, bk_ref, wv_ref, bv_ref,
                     wo_ref, bo_ref, ln1g_ref, ln1b_ref,
                     w1_ref, b1_ref, w2_ref, b2_ref, ln2g_ref, ln2b_ref,
                     wh_ref, bh_ref, gate_ref, coltype_ref,
                     out_ref):
    x = x_ref[...]                                   # [bt, S, D] f32
    bt, S, D = x.shape

    def mm(a_f32, w_ref):
        # bf16 MXU operands, f32 accumulate; elementwise stays f32.
        return jnp.dot(a_f32.astype(jnp.bfloat16), w_ref[...],
                       preferred_element_type=jnp.float32)

    def layer_norm(h, g_ref, b_ref):
        # single-pass variance: E[x^2] - mean^2 (one XLU reduction fewer)
        mu = jnp.mean(h, axis=-1, keepdims=True)
        var = jnp.mean(h * h, axis=-1, keepdims=True) - mu * mu
        return (h - mu) * jax.lax.rsqrt(var + 1e-12) * g_ref[...] + b_ref[...]

    # --- K / V over all positions: batch folded into the matmul M dim ---
    x2 = x.reshape(bt * S, D)
    k = (mm(x2, wk_ref) + bk_ref[...]).reshape(bt, S, D)
    v = (mm(x2, wv_ref) + bv_ref[...]).reshape(bt, S, D)

    # --- Q only for the [CLS] row (the only row whose output is consumed) ---
    x_cls = x[:, 0, :]                               # [bt, D]
    q0 = mm(x_cls, wq_ref) + bq_ref[...]             # [bt, D]

    # Single-head attention for the CLS query: VPU mul + XLU reduce
    # (avoids B tiny batched MXU calls at these shapes).
    scores = jnp.sum(q0[:, None, :] * k, axis=-1) * (1.0 / float(D) ** 0.5)
    scores = scores + (mask_ref[...] - 1.0) * 1e9    # additive -inf on padding
    scores = scores - jnp.max(scores, axis=-1, keepdims=True)
    p = jnp.exp(scores)                              # [bt, S] f32
    p = p * pl.reciprocal(jnp.sum(p, axis=-1, keepdims=True), approx=True)

    ctx = jnp.sum(p[:, :, None] * v, axis=1)         # [bt, D]
    attn = mm(ctx, wo_ref) + bo_ref[...]             # [bt, D]

    h1 = layer_norm(x_cls + attn, ln1g_ref, ln1b_ref)

    # --- feed-forward on the CLS row only ---
    ff = mm(h1, w1_ref) + b1_ref[...]                # [bt, H]
    ff = jax.nn.gelu(ff, approximate=True)
    ff = mm(ff, w2_ref) + b2_ref[...]                # [bt, D]
    pooled = layer_norm(h1 + ff, ln2g_ref, ln2b_ref) # [bt, D]

    # --- fused heads: one lane-dense [bt, PAD] slab ---
    logits = mm(pooled, wh_ref) + bh_ref[...]        # [bt, PAD]
    probs = jax.nn.sigmoid(logits)

    # One-hot gather: gate[:, C+j] == chapter_prob of the chapter owning block j.
    gate = jnp.dot(probs, gate_ref[...], preferred_element_type=jnp.float32)

    coltype = coltype_ref[...]                       # [1, PAD]: 1=chapter, 2=block, 0=pad
    keep = (coltype == 1.0) | ((coltype == 2.0) & (gate >= 0.5))
    out_ref[...] = jnp.where(keep, probs, 0.0)


# ----------------------------------------------------------------------------
# Wrapper
# ----------------------------------------------------------------------------
def _const_index_map(ndim):
    return lambda i: (0,) * ndim


def _pick_batch_tile(B):
    # Output block is 2-D [bt, PAD]: the sublane (batch) tile must be a
    # multiple of 8 or cover the whole batch.
    return 8 if (B % 8 == 0) else B


def _fused_pallas_forward(x_emb, key_mask, p):
    B, S, D = x_emb.shape
    H = p["w1"].shape[1]
    PAD = p["pad"]
    bt = _pick_batch_tile(B)

    weight_args = (p["wq"], p["bq"], p["wk"], p["bk"], p["wv"], p["bv"],
                   p["wo"], p["bo"], p["ln1g"], p["ln1b"],
                   p["w1"], p["b1"], p["w2"], p["b2"], p["ln2g"], p["ln2b"],
                   p["wh"], p["bh"], p["gate"], p["coltype"])

    in_specs = ([pl.BlockSpec((bt, S, D), lambda i: (i, 0, 0)),
                 pl.BlockSpec((bt, S), lambda i: (i, 0))]
                + [pl.BlockSpec(a.shape, _const_index_map(a.ndim))
                   for a in weight_args])

    # Explicit VMEM budget: resident weights + double-buffered activation tiles.
    tile_bytes = bt * S * D * 4 + bt * S * 4 + bt * PAD * 4
    resident_bytes = sum(int(a.nbytes) for a in weight_args)
    vmem_budget = int(min(max(2 * tile_bytes + resident_bytes + (1 << 20),
                              4 << 20), 32 << 20))

    flops = int(B * (2 * 2 * S * D * D        # K, V projections
                     + 2 * 2 * D * D          # Q (CLS) + output projection
                     + 2 * 2 * S * D          # scores + context
                     + 2 * 2 * D * H          # FFN
                     + 2 * D * PAD            # heads
                     + 2 * PAD * PAD))        # one-hot gate gather
    transcendentals = int(B * (S + H + 2 * PAD))
    bytes_accessed = int(x_emb.nbytes + key_mask.nbytes
                         + resident_bytes + B * PAD * 4)

    return pl.pallas_call(
        icd_fused_kernel,
        out_shape=jax.ShapeDtypeStruct((B, PAD), jnp.float32),
        grid=(B // bt,),
        in_specs=in_specs,
        out_specs=pl.BlockSpec((bt, PAD), lambda i: (i, 0)),
        compiler_params=pltpu.CompilerParams(
            dimension_semantics=("parallel",),
            vmem_limit_bytes=vmem_budget),
        cost_estimate=pl.CostEstimate(flops=flops,
                                      transcendentals=transcendentals,
                                      bytes_accessed=bytes_accessed),
    )(x_emb, key_mask, *weight_args)


def icd_bert_forward(input_ids, attention_mask, params):
    # --- glue: embedding lookup (data-dependent gather, plain JAX) ---
    B, S = input_ids.shape
    x_emb = params["word_emb"][input_ids] + params["pos_emb"][None, :S, :]
    key_mask = attention_mask.astype(jnp.float32)    # [B, S], 1=real, 0=pad

    out_slab = _fused_pallas_forward(x_emb.astype(jnp.float32), key_mask, params)

    C, NB = params["n_chapters"], params["n_blocks"]
    return {"chapters": out_slab[:, :C], "blocks": out_slab[:, C:C + NB]}


# ----------------------------------------------------------------------------
# Deterministic parameter construction
# ----------------------------------------------------------------------------
def make_params(key, vocab, S, D, H, blocks_in_chapters: List[List[str]]):
    C = len(blocks_in_chapters)
    sizes = [len(b) for b in blocks_in_chapters]
    NB = sum(sizes)
    PAD = max(128, ((C + NB + 127) // 128) * 128)

    ks = jax.random.split(key, 32)
    it = iter(range(32))

    def w(shape, fan_in):
        return (jax.random.normal(ks[next(it)], shape, jnp.float32)
                * (1.0 / np.sqrt(fan_in))).astype(jnp.float32)

    def b(shape):
        return (jax.random.normal(ks[next(it)], shape, jnp.float32)
                * 0.02).astype(jnp.float32)

    bf = jnp.bfloat16
    params = dict(
        word_emb=w((vocab, D), D),
        pos_emb=w((S, D), D),
        # MXU weight operands stored bf16; biases / LN params stay f32.
        wq=w((D, D), D).astype(bf), bq=b((1, D)),
        wk=w((D, D), D).astype(bf), bk=b((1, D)),
        wv=w((D, D), D).astype(bf), bv=b((1, D)),
        wo=w((D, D), D).astype(bf), bo=b((1, D)),
        ln1g=jnp.ones((1, D), jnp.float32),
        ln1b=jnp.zeros((1, D), jnp.float32),
        w1=w((D, H), D).astype(bf), b1=b((1, H)),
        w2=w((H, D), H).astype(bf), b2=b((1, D)),
        ln2g=jnp.ones((1, D), jnp.float32),
        ln2b=jnp.zeros((1, D), jnp.float32),
        n_chapters=C, n_blocks=NB, pad=PAD,
    )

    # Heads: chapter Linear(D, C) and per-chapter block Linears concatenated
    # along the out dim, packed into one lane-dense [D, PAD] weight.
    wc = np.asarray(w((D, C), D))
    bc = np.asarray(b((1, C)))
    wb = np.asarray(w((D, NB), D))
    bb = np.asarray(b((1, NB)))

    wh = np.zeros((D, PAD), np.float32)
    wh[:, :C] = wc
    wh[:, C:C + NB] = wb
    bh = np.zeros((1, PAD), np.float32)
    bh[:, :C] = bc
    bh[:, C:C + NB] = bb

    # One-hot chapter -> block map inside the padded slab (exact gather):
    # gate_col(C + j) copies the probability of the chapter owning block j.
    gate = np.zeros((PAD, PAD), np.float32)
    coltype = np.zeros((1, PAD), np.float32)
    coltype[0, :C] = 1.0
    start = 0
    for c, n in enumerate(sizes):
        gate[c, C + start:C + start + n] = 1.0
        coltype[0, C + start:C + start + n] = 2.0
        start += n

    params["wh"] = jnp.asarray(wh).astype(bf)
    params["bh"] = jnp.asarray(bh)
    params["gate"] = jnp.asarray(gate)
    params["coltype"] = jnp.asarray(coltype)
    return params


if __name__ == "__main__":
    B, S, D, H = 2, 8, 32, 64
    VOCAB = 50
    blocks_in_chapters = [["b0", "b1", "b2"],
                          ["b3", "b4"],
                          ["b5", "b6", "b7", "b8"],
                          ["b9", "b10", "b11"]]
    n_chapters = len(blocks_in_chapters)
    n_blocks = sum(len(b) for b in blocks_in_chapters)

    root = jax.random.PRNGKey(0)
    k_param, k_ids = jax.random.split(root)
    params = make_params(k_param, VOCAB, S, D, H, blocks_in_chapters)

    input_ids = jax.random.randint(k_ids, (B, S), 0, VOCAB, dtype=jnp.int32)
    attn_mask_np = np.ones((B, S), dtype=np.int32)
    attn_mask_np[1, 6:] = 0  # pad the tail of the second example
    attention_mask = jnp.asarray(attn_mask_np)

    out = icd_bert_forward(input_ids, attention_mask, params)
    jax.block_until_ready(out)

    assert out["chapters"].shape == (B, n_chapters)
    assert out["blocks"].shape == (B, n_blocks)
    assert bool(jnp.all((out["chapters"] >= 0) & (out["chapters"] <= 1)))
    assert bool(jnp.all((out["blocks"] >= 0) & (out["blocks"] <= 1)))
    print("KERNEL_OK")
</pallas_src>

<mosaic_0001>
module attributes {stable_mosaic.version = 11 : i64} {
  func.func @icd_fused_kernel(%arg0: i32, %arg1: memref<2x8x32xf32, #tpu.memory_space<vmem>>, %arg2: memref<2x8xf32, #tpu.memory_space<vmem>>, %arg3: memref<32x32xbf16, #tpu.memory_space<vmem>>, %arg4: memref<1x32xf32, #tpu.memory_space<vmem>>, %arg5: memref<32x32xbf16, #tpu.memory_space<vmem>>, %arg6: memref<1x32xf32, #tpu.memory_space<vmem>>, %arg7: memref<32x32xbf16, #tpu.memory_space<vmem>>, %arg8: memref<1x32xf32, #tpu.memory_space<vmem>>, %arg9: memref<32x32xbf16, #tpu.memory_space<vmem>>, %arg10: memref<1x32xf32, #tpu.memory_space<vmem>>, %arg11: memref<1x32xf32, #tpu.memory_space<vmem>>, %arg12: memref<1x32xf32, #tpu.memory_space<vmem>>, %arg13: memref<32x64xbf16, #tpu.memory_space<vmem>>, %arg14: memref<1x64xf32, #tpu.memory_space<vmem>>, %arg15: memref<64x32xbf16, #tpu.memory_space<vmem>>, %arg16: memref<1x32xf32, #tpu.memory_space<vmem>>, %arg17: memref<1x32xf32, #tpu.memory_space<vmem>>, %arg18: memref<1x32xf32, #tpu.memory_space<vmem>>, %arg19: memref<32x128xbf16, #tpu.memory_space<vmem>>, %arg20: memref<1x128xf32, #tpu.memory_space<vmem>>, %arg21: memref<128x128xf32, #tpu.memory_space<vmem>>, %arg22: memref<1x128xf32, #tpu.memory_space<vmem>>, %arg23: memref<2x128xf32, #tpu.memory_space<vmem>>) attributes {dimension_semantics = [#tpu.dimension_semantics<parallel>], iteration_bounds = array<i64: 1>, scalar_prefetch = 0 : i64, scratch_operands = 0 : i64, tpu.core_type = #tpu.core_type<tc>, window_params = [{transform_indices = @transform_0, window_bounds = array<i64: 2, 8, 32>}, {transform_indices = @transform_1, window_bounds = array<i64: 2, 8>}, {pipeline_mode = #tpu.pipeline_mode<synchronous>, transform_indices = @transform_2, window_bounds = array<i64: 32, 32>}, {pipeline_mode = #tpu.pipeline_mode<synchronous>, transform_indices = @transform_3, window_bounds = array<i64: 1, 32>}, {pipeline_mode = #tpu.pipeline_mode<synchronous>, transform_indices = @transform_4, window_bounds = array<i64: 32, 32>}, {pipeline_mode = #tpu.pipeline_mode<synchronous>, transform_indices = @transform_5, window_bounds = array<i64: 1, 32>}, {pipeline_mode = #tpu.pipeline_mode<synchronous>, transform_indices = @transform_6, window_bounds = array<i64: 32, 32>}, {pipeline_mode = #tpu.pipeline_mode<synchronous>, transform_indices = @transform_7, window_bounds = array<i64: 1, 32>}, {pipeline_mode = #tpu.pipeline_mode<synchronous>, transform_indices = @transform_8, window_bounds = array<i64: 32, 32>}, {pipeline_mode = #tpu.pipeline_mode<synchronous>, transform_indices = @transform_9, window_bounds = array<i64: 1, 32>}, {pipeline_mode = #tpu.pipeline_mode<synchronous>, transform_indices = @transform_10, window_bounds = array<i64: 1, 32>}, {pipeline_mode = #tpu.pipeline_mode<synchronous>, transform_indices = @transform_11, window_bounds = array<i64: 1, 32>}, {pipeline_mode = #tpu.pipeline_mode<synchronous>, transform_indices = @transform_12, window_bounds = array<i64: 32, 64>}, {pipeline_mode = #tpu.pipeline_mode<synchronous>, transform_indices = @transform_13, window_bounds = array<i64: 1, 64>}, {pipeline_mode = #tpu.pipeline_mode<synchronous>, transform_indices = @transform_14, window_bounds = array<i64: 64, 32>}, {pipeline_mode = #tpu.pipeline_mode<synchronous>, transform_indices = @transform_15, window_bounds = array<i64: 1, 32>}, {pipeline_mode = #tpu.pipeline_mode<synchronous>, transform_indices = @transform_16, window_bounds = array<i64: 1, 32>}, {pipeline_mode = #tpu.pipeline_mode<synchronous>, transform_indices = @transform_17, window_bounds = array<i64: 1, 32>}, {pipeline_mode = #tpu.pipeline_mode<synchronous>, transform_indices = @transform_18, window_bounds = array<i64: 32, 128>}, {pipeline_mode = #tpu.pipeline_mode<synchronous>, transform_indices = @transform_19, window_bounds = array<i64: 1, 128>}, {pipeline_mode = #tpu.pipeline_mode<synchronous>, transform_indices = @transform_20, window_bounds = array<i64: 128, 128>}, {pipeline_mode = #tpu.pipeline_mode<synchronous>, transform_indices = @transform_21, window_bounds = array<i64: 1, 128>}, {transform_indices = @transform_22, window_bounds = array<i64: 2, 128>}]} {
    %c0 = arith.constant 0 : index
    %c0_0 = arith.constant 0 : index
    %c0_1 = arith.constant 0 : index
    %0 = vector.load %arg1[%c0, %c0_0, %c0_1] : memref<2x8x32xf32, #tpu.memory_space<vmem>>, vector<2x8x32xf32>
    %1 = vector.shape_cast %0 : vector<2x8x32xf32> to vector<16x32xf32>
    %2 = arith.truncf %1 : vector<16x32xf32> to vector<16x32xbf16>
    %c0_2 = arith.constant 0 : index
    %c0_3 = arith.constant 0 : index
    %3 = vector.load %arg5[%c0_2, %c0_3] : memref<32x32xbf16, #tpu.memory_space<vmem>>, vector<32x32xbf16>
    %cst = arith.constant dense<0.000000e+00> : vector<16x32xf32>
    %4 = tpu.matmul %2, %3, %cst {dimension_numbers = #tpu.dot_dimension_numbers<[1], [0], [0], [1], [0, 0, 1, 1], [], []>} : vector<16x32xbf16>, vector<32x32xbf16>, vector<16x32xf32> -> vector<16x32xf32>
    %c0_4 = arith.constant 0 : index
    %c0_5 = arith.constant 0 : index
    %5 = vector.load %arg6[%c0_4, %c0_5] : memref<1x32xf32, #tpu.memory_space<vmem>>, vector<1x32xf32>
    %6 = vector.broadcast %5 : vector<1x32xf32> to vector<16x32xf32>
    %7 = arith.addf %4, %6 : vector<16x32xf32>
    %8 = vector.shape_cast %7 : vector<16x32xf32> to vector<2x8x32xf32>
    %9 = arith.truncf %1 : vector<16x32xf32> to vector<16x32xbf16>
    %c0_6 = arith.constant 0 : index
    %c0_7 = arith.constant 0 : index
    %10 = vector.load %arg7[%c0_6, %c0_7] : memref<32x32xbf16, #tpu.memory_space<vmem>>, vector<32x32xbf16>
    %cst_8 = arith.constant dense<0.000000e+00> : vector<16x32xf32>
    %11 = tpu.matmul %9, %10, %cst_8 {dimension_numbers = #tpu.dot_dimension_numbers<[1], [0], [0], [1], [0, 0, 1, 1], [], []>} : vector<16x32xbf16>, vector<32x32xbf16>, vector<16x32xf32> -> vector<16x32xf32>
    %c0_9 = arith.constant 0 : index
    %c0_10 = arith.constant 0 : index
    %12 = vector.load %arg8[%c0_9, %c0_10] : memref<1x32xf32, #tpu.memory_space<vmem>>, vector<1x32xf32>
    %13 = vector.broadcast %12 : vector<1x32xf32> to vector<16x32xf32>
    %14 = arith.addf %11, %13 : vector<16x32xf32>
    %15 = vector.shape_cast %14 : vector<16x32xf32> to vector<2x8x32xf32>
    %16 = vector.extract_strided_slice %0 {offsets = [0, 0, 0], sizes = [2, 1, 32], strides = [1, 1, 1]} : vector<2x8x32xf32> to vector<2x1x32xf32>
    %17 = vector.shape_cast %16 : vector<2x1x32xf32> to vector<2x32xf32>
    %18 = arith.truncf %17 : vector<2x32xf32> to vector<2x32xbf16>
    %c0_11 = arith.constant 0 : index
    %c0_12 = arith.constant 0 : index
    %19 = vector.load %arg3[%c0_11, %c0_12] : memref<32x32xbf16, #tpu.memory_space<vmem>>, vector<32x32xbf16>
    %cst_13 = arith.constant dense<0.000000e+00> : vector<2x32xf32>
    %20 = tpu.matmul %18, %19, %cst_13 {dimension_numbers = #tpu.dot_dimension_numbers<[1], [0], [0], [1], [0, 0, 1, 1], [], []>} : vector<2x32xbf16>, vector<32x32xbf16>, vector<2x32xf32> -> vector<2x32xf32>
    %c0_14 = arith.constant 0 : index
    %c0_15 = arith.constant 0 : index
    %21 = vector.load %arg4[%c0_14, %c0_15] : memref<1x32xf32, #tpu.memory_space<vmem>>, vector<1x32xf32>
    %22 = vector.broadcast %21 : vector<1x32xf32> to vector<2x32xf32>
    %23 = arith.addf %20, %22 : vector<2x32xf32>
    %24 = vector.shape_cast %23 : vector<2x32xf32> to vector<2x1x32xf32>
    %25 = vector.broadcast %24 : vector<2x1x32xf32> to vector<2x8x32xf32>
    %26 = arith.mulf %25, %8 : vector<2x8x32xf32>
    %cst_16 = arith.constant dense<0.000000e+00> : vector<2x8xf32>
    %27 = vector.multi_reduction <add>, %26, %cst_16 [2] : vector<2x8x32xf32> to vector<2x8xf32>
    %cst_17 = arith.constant 0.176776692 : f32
    %28 = vector.broadcast %cst_17 : f32 to vector<2x8xf32>
    %29 = arith.mulf %27, %28 : vector<2x8xf32>
    %c0_18 = arith.constant 0 : index
    %c0_19 = arith.constant 0 : index
    %30 = vector.load %arg2[%c0_18, %c0_19] : memref<2x8xf32, #tpu.memory_space<vmem>>, vector<2x8xf32>
    %cst_20 = arith.constant 1.000000e+00 : f32
    %31 = vector.broadcast %cst_20 : f32 to vector<2x8xf32>
    %32 = arith.subf %30, %31 : vector<2x8xf32>
    %cst_21 = arith.constant 1.000000e+09 : f32
    %33 = vector.broadcast %cst_21 : f32 to vector<2x8xf32>
    %34 = arith.mulf %32, %33 : vector<2x8xf32>
    %35 = arith.addf %29, %34 : vector<2x8xf32>
    %cst_22 = arith.constant dense<0xFF800000> : vector<2xf32>
    %36 = vector.multi_reduction <maximumf>, %35, %cst_22 [1] : vector<2x8xf32> to vector<2xf32>
    %37 = vector.shape_cast %36 : vector<2xf32> to vector<2x1xf32>
    %38 = vector.broadcast %37 : vector<2x1xf32> to vector<2x8xf32>
    %39 = arith.subf %35, %38 : vector<2x8xf32>
    %40 = math.exp %39 : vector<2x8xf32>
    %cst_23 = arith.constant dense<0.000000e+00> : vector<2xf32>
    %41 = vector.multi_reduction <add>, %40, %cst_23 [1] : vector<2x8xf32> to vector<2xf32>
    %42 = vector.shape_cast %41 : vector<2xf32> to vector<2x1xf32>
    %43 = tpu.reciprocal %42 {approx = true} : vector<2x1xf32> -> vector<2x1xf32>
    %44 = vector.broadcast %43 : vector<2x1xf32> to vector<2x8xf32>
    %45 = arith.mulf %40, %44 : vector<2x8xf32>
    %46 = vector.shape_cast %45 : vector<2x8xf32> to vector<2x8x1xf32>
    %47 = vector.broadcast %46 : vector<2x8x1xf32> to vector<2x8x32xf32>
    %48 = arith.mulf %47, %15 : vector<2x8x32xf32>
    %cst_24 = arith.constant dense<0.000000e+00> : vector<2x32xf32>
    %49 = vector.multi_reduction <add>, %48, %cst_24 [1] : vector<2x8x32xf32> to vector<2x32xf32>
    %50 = arith.truncf %49 : vector<2x32xf32> to vector<2x32xbf16>
    %c0_25 = arith.constant 0 : index
    %c0_26 = arith.constant 0 : index
    %51 = vector.load %arg9[%c0_25, %c0_26] : memref<32x32xbf16, #tpu.memory_space<vmem>>, vector<32x32xbf16>
    %cst_27 = arith.constant dense<0.000000e+00> : vector<2x32xf32>
    %52 = tpu.matmul %50, %51, %cst_27 {dimension_numbers = #tpu.dot_dimension_numbers<[1], [0], [0], [1], [0, 0, 1, 1], [], []>} : vector<2x32xbf16>, vector<32x32xbf16>, vector<2x32xf32> -> vector<2x32xf32>
    %c0_28 = arith.constant 0 : index
    %c0_29 = arith.constant 0 : index
    %53 = vector.load %arg10[%c0_28, %c0_29] : memref<1x32xf32, #tpu.memory_space<vmem>>, vector<1x32xf32>
    %54 = vector.broadcast %53 : vector<1x32xf32> to vector<2x32xf32>
    %55 = arith.addf %52, %54 : vector<2x32xf32>
    %56 = arith.addf %17, %55 : vector<2x32xf32>
    %cst_30 = arith.constant dense<0.000000e+00> : vector<2xf32>
    %57 = vector.multi_reduction <add>, %56, %cst_30 [1] : vector<2x32xf32> to vector<2xf32>
    %58 = vector.shape_cast %57 : vector<2xf32> to vector<2x1xf32>
    %cst_31 = arith.constant 3.200000e+01 : f32
    %59 = vector.broadcast %cst_31 : f32 to vector<2x1xf32>
    %60 = arith.divf %58, %59 : vector<2x1xf32>
    %61 = arith.mulf %56, %56 : vector<2x32xf32>
    %cst_32 = arith.constant dense<0.000000e+00> : vector<2xf32>
    %62 = vector.multi_reduction <add>, %61, %cst_32 [1] : vector<2x32xf32> to vector<2xf32>
    %63 = vector.shape_cast %62 : vector<2xf32> to vector<2x1xf32>
    %cst_33 = arith.constant 3.200000e+01 : f32
    %64 = vector.broadcast %cst_33 : f32 to vector<2x1xf32>
    %65 = arith.divf %63, %64 : vector<2x1xf32>
    %66 = arith.mulf %60, %60 : vector<2x1xf32>
    %67 = arith.subf %65, %66 : vector<2x1xf32>
    %68 = vector.broadcast %60 : vector<2x1xf32> to vector<2x32xf32>
    %69 = arith.subf %56, %68 : vector<2x32xf32>
    %cst_34 = arith.constant 9.99999996E-13 : f32
    %70 = vector.broadcast %cst_34 : f32 to vector<2x1xf32>
    %71 = arith.addf %67, %70 : vector<2x1xf32>
    %72 = math.rsqrt %71 : vector<2x1xf32>
    %73 = vector.broadcast %72 : vector<2x1xf32> to vector<2x32xf32>
    %74 = arith.mulf %69, %73 : vector<2x32xf32>
    %c0_35 = arith.constant 0 : index
    %c0_36 = arith.constant 0 : index
    %75 = vector.load %arg11[%c0_35, %c0_36] : memref<1x32xf32, #tpu.memory_space<vmem>>, vector<1x32xf32>
    %76 = vector.broadcast %75 : vector<1x32xf32> to vector<2x32xf32>
    %77 = arith.mulf %74, %76 : vector<2x32xf32>
    %c0_37 = arith.constant 0 : index
    %c0_38 = arith.constant 0 : index
    %78 = vector.load %arg12[%c0_37, %c0_38] : memref<1x32xf32, #tpu.memory_space<vmem>>, vector<1x32xf32>
    %79 = vector.broadcast %78 : vector<1x32xf32> to vector<2x32xf32>
    %80 = arith.addf %77, %79 : vector<2x32xf32>
    %81 = arith.truncf %80 : vector<2x32xf32> to vector<2x32xbf16>
    %c0_39 = arith.constant 0 : index
    %c0_40 = arith.constant 0 : index
    %82 = vector.load %arg13[%c0_39, %c0_40] : memref<32x64xbf16, #tpu.memory_space<vmem>>, vector<32x64xbf16>
    %cst_41 = arith.constant dense<0.000000e+00> : vector<2x64xf32>
    %83 = tpu.matmul %81, %82, %cst_41 {dimension_numbers = #tpu.dot_dimension_numbers<[1], [0], [0], [1], [0, 0, 1, 1], [], []>} : vector<2x32xbf16>, vector<32x64xbf16>, vector<2x64xf32> -> vector<2x64xf32>
    %c0_42 = arith.constant 0 : index
    %c0_43 = arith.constant 0 : index
    %84 = vector.load %arg14[%c0_42, %c0_43] : memref<1x64xf32, #tpu.memory_space<vmem>>, vector<1x64xf32>
    %85 = vector.broadcast %84 : vector<1x64xf32> to vector<2x64xf32>
    %86 = arith.addf %83, %85 : vector<2x64xf32>
    %87 = arith.mulf %86, %86 : vector<2x64xf32>
    %88 = arith.mulf %86, %87 : vector<2x64xf32>
    %cst_44 = arith.constant 4.471500e-02 : f32
    %89 = vector.broadcast %cst_44 : f32 to vector<2x64xf32>
    %90 = arith.mulf %89, %88 : vector<2x64xf32>
    %91 = arith.addf %86, %90 : vector<2x64xf32>
    %cst_45 = arith.constant 0.797884583 : f32
    %92 = vector.broadcast %cst_45 : f32 to vector<2x64xf32>
    %93 = arith.mulf %92, %91 : vector<2x64xf32>
    %94 = math.tanh %93 : vector<2x64xf32>
    %cst_46 = arith.constant 1.000000e+00 : f32
    %95 = vector.broadcast %cst_46 : f32 to vector<2x64xf32>
    %96 = arith.addf %95, %94 : vector<2x64xf32>
    %cst_47 = arith.constant 5.000000e-01 : f32
    %97 = vector.broadcast %cst_47 : f32 to vector<2x64xf32>
    %98 = arith.mulf %97, %96 : vector<2x64xf32>
    %99 = arith.mulf %86, %98 : vector<2x64xf32>
    %100 = arith.truncf %99 : vector<2x64xf32> to vector<2x64xbf16>
    %c0_48 = arith.constant 0 : index
    %c0_49 = arith.constant 0 : index
    %101 = vector.load %arg15[%c0_48, %c0_49] : memref<64x32xbf16, #tpu.memory_space<vmem>>, vector<64x32xbf16>
    %cst_50 = arith.constant dense<0.000000e+00> : vector<2x32xf32>
    %102 = tpu.matmul %100, %101, %cst_50 {dimension_numbers = #tpu.dot_dimension_numbers<[1], [0], [0], [1], [0, 0, 1, 1], [], []>} : vector<2x64xbf16>, vector<64x32xbf16>, vector<2x32xf32> -> vector<2x32xf32>
    %c0_51 = arith.constant 0 : index
    %c0_52 = arith.constant 0 : index
    %103 = vector.load %arg16[%c0_51, %c0_52] : memref<1x32xf32, #tpu.memory_space<vmem>>, vector<1x32xf32>
    %104 = vector.broadcast %103 : vector<1x32xf32> to vector<2x32xf32>
    %105 = arith.addf %102, %104 : vector<2x32xf32>
    %106 = arith.addf %80, %105 : vector<2x32xf32>
    %cst_53 = arith.constant dense<0.000000e+00> : vector<2xf32>
    %107 = vector.multi_reduction <add>, %106, %cst_53 [1] : vector<2x32xf32> to vector<2xf32>
    %108 = vector.shape_cast %107 : vector<2xf32> to vector<2x1xf32>
    %cst_54 = arith.constant 3.200000e+01 : f32
    %109 = vector.broadcast %cst_54 : f32 to vector<2x1xf32>
    %110 = arith.divf %108, %109 : vector<2x1xf32>
    %111 = arith.mulf %106, %106 : vector<2x32xf32>
    %cst_55 = arith.constant dense<0.000000e+00> : vector<2xf32>
    %112 = vector.multi_reduction <add>, %111, %cst_55 [1] : vector<2x32xf32> to vector<2xf32>
    %113 = vector.shape_cast %112 : vector<2xf32> to vector<2x1xf32>
    %cst_56 = arith.constant 3.200000e+01 : f32
    %114 = vector.broadcast %cst_56 : f32 to vector<2x1xf32>
    %115 = arith.divf %113, %114 : vector<2x1xf32>
    %116 = arith.mulf %110, %110 : vector<2x1xf32>
    %117 = arith.subf %115, %116 : vector<2x1xf32>
    %118 = vector.broadcast %110 : vector<2x1xf32> to vector<2x32xf32>
    %119 = arith.subf %106, %118 : vector<2x32xf32>
    %cst_57 = arith.constant 9.99999996E-13 : f32
    %120 = vector.broadcast %cst_57 : f32 to vector<2x1xf32>
    %121 = arith.addf %117, %120 : vector<2x1xf32>
    %122 = math.rsqrt %121 : vector<2x1xf32>
    %123 = vector.broadcast %122 : vector<2x1xf32> to vector<2x32xf32>
    %124 = arith.mulf %119, %123 : vector<2x32xf32>
    %c0_58 = arith.constant 0 : index
    %c0_59 = arith.constant 0 : index
    %125 = vector.load %arg17[%c0_58, %c0_59] : memref<1x32xf32, #tpu.memory_space<vmem>>, vector<1x32xf32>
    %126 = vector.broadcast %125 : vector<1x32xf32> to vector<2x32xf32>
    %127 = arith.mulf %124, %126 : vector<2x32xf32>
    %c0_60 = arith.constant 0 : index
    %c0_61 = arith.constant 0 : index
    %128 = vector.load %arg18[%c0_60, %c0_61] : memref<1x32xf32, #tpu.memory_space<vmem>>, vector<1x32xf32>
    %129 = vector.broadcast %128 : vector<1x32xf32> to vector<2x32xf32>
    %130 = arith.addf %127, %129 : vector<2x32xf32>
    %131 = arith.truncf %130 : vector<2x32xf32> to vector<2x32xbf16>
    %c0_62 = arith.constant 0 : index
    %c0_63 = arith.constant 0 : index
    %132 = vector.load %arg19[%c0_62, %c0_63] : memref<32x128xbf16, #tpu.memory_space<vmem>>, vector<32x128xbf16>
    %cst_64 = arith.constant dense<0.000000e+00> : vector<2x128xf32>
    %133 = tpu.matmul %131, %132, %cst_64 {dimension_numbers = #tpu.dot_dimension_numbers<[1], [0], [0], [1], [0, 0, 1, 1], [], []>} : vector<2x32xbf16>, vector<32x128xbf16>, vector<2x128xf32> -> vector<2x128xf32>
    %c0_65 = arith.constant 0 : index
    %c0_66 = arith.constant 0 : index
    %134 = vector.load %arg20[%c0_65, %c0_66] : memref<1x128xf32, #tpu.memory_space<vmem>>, vector<1x128xf32>
    %135 = vector.broadcast %134 : vector<1x128xf32> to vector<2x128xf32>
    %136 = arith.addf %133, %135 : vector<2x128xf32>
    %137 = arith.negf %136 : vector<2x128xf32>
    %138 = math.exp %137 : vector<2x128xf32>
    %cst_67 = arith.constant 1.000000e+00 : f32
    %139 = vector.broadcast %cst_67 : f32 to vector<2x128xf32>
    %140 = arith.addf %139, %138 : vector<2x128xf32>
    %141 = arith.divf %139, %140 : vector<2x128xf32>
    %c0_68 = arith.constant 0 : index
    %c0_69 = arith.constant 0 : index
    %142 = vector.load %arg21[%c0_68, %c0_69] : memref<128x128xf32, #tpu.memory_space<vmem>>, vector<128x128xf32>
    %cst_70 = arith.constant dense<0.000000e+00> : vector<2x128xf32>
    %143 = tpu.matmul %141, %142, %cst_70 {dimension_numbers = #tpu.dot_dimension_numbers<[1], [0], [0], [1], [0, 0, 1, 1], [], []>} : vector<2x128xf32>, vector<128x128xf32>, vector<2x128xf32> -> vector<2x128xf32>
    %c0_71 = arith.constant 0 : index
    %c0_72 = arith.constant 0 : index
    %144 = vector.load %arg22[%c0_71, %c0_72] : memref<1x128xf32, #tpu.memory_space<vmem>>, vector<1x128xf32>
    %cst_73 = arith.constant 1.000000e+00 : f32
    %145 = vector.broadcast %cst_73 : f32 to vector<1x128xf32>
    %146 = arith.cmpf oeq, %144, %145 : vector<1x128xf32>
    %cst_74 = arith.constant 2.000000e+00 : f32
    %147 = vector.broadcast %cst_74 : f32 to vector<1x128xf32>
    %148 = arith.cmpf oeq, %144, %147 : vector<1x128xf32>
    %cst_75 = arith.constant 5.000000e-01 : f32
    %149 = vector.broadcast %cst_75 : f32 to vector<2x128xf32>
    %150 = arith.cmpf oge, %143, %149 : vector<2x128xf32>
    %151 = vector.broadcast %148 : vector<1x128xi1> to vector<2x128xi1>
    %152 = arith.andi %151, %150 : vector<2x128xi1>
    %153 = vector.broadcast %146 : vector<1x128xi1> to vector<2x128xi1>
    %154 = arith.ori %153, %152 : vector<2x128xi1>
    %cst_76 = arith.constant 0.000000e+00 : f32
    %155 = vector.broadcast %cst_76 : f32 to vector<2x128xf32>
    %156 = arith.select %154, %141, %155 : vector<2x128xi1>, vector<2x128xf32>
    %c0_77 = arith.constant 0 : index
    %c0_78 = arith.constant 0 : index
    %157 = vector.load %arg23[%c0_77, %c0_78] : memref<2x128xf32, #tpu.memory_space<vmem>>, vector<2x128xf32>
    tpu.vector_store %arg23[%c0_77, %c0_78], %156 {strides = array<i32>} : memref<2x128xf32, #tpu.memory_space<vmem>>, vector<2x128xf32>,
    return
  }
  func.func @transform_0(%arg0: i32) -> (i32, i32, i32) {
    %c0_i32 = arith.constant 0 : i32
    %c0_i32_0 = arith.constant 0 : i32
    %c0_i32_1 = arith.constant 0 : i32
    return %arg0, %c0_i32, %c0_i32_0 : i32, i32, i32
  }
  func.func @transform_1(%arg0: i32) -> (i32, i32) {
    %c0_i32 = arith.constant 0 : i32
    %c0_i32_0 = arith.constant 0 : i32
    return %arg0, %c0_i32 : i32, i32
  }
  func.func @transform_2(%arg0: i32) -> (i32, i32) {
    %c0_i32 = arith.constant 0 : i32
    %c0_i32_0 = arith.constant 0 : i32
    %c0_i32_1 = arith.constant 0 : i32
    return %c0_i32, %c0_i32_0 : i32, i32
  }
  func.func @transform_3(%arg0: i32) -> (i32, i32) {
    %c0_i32 = arith.constant 0 : i32
    %c0_i32_0 = arith.constant 0 : i32
    %c0_i32_1 = arith.constant 0 : i32
    return %c0_i32, %c0_i32_0 : i32, i32
  }
  func.func @transform_4(%arg0: i32) -> (i32, i32) {
    %c0_i32 = arith.constant 0 : i32
    %c0_i32_0 = arith.constant 0 : i32
    %c0_i32_1 = arith.constant 0 : i32
    return %c0_i32, %c0_i32_0 : i32, i32
  }
  func.func @transform_5(%arg0: i32) -> (i32, i32) {
    %c0_i32 = arith.constant 0 : i32
    %c0_i32_0 = arith.constant 0 : i32
    %c0_i32_1 = arith.constant 0 : i32
    return %c0_i32, %c0_i32_0 : i32, i32
  }
  func.func @transform_6(%arg0: i32) -> (i32, i32) {
    %c0_i32 = arith.constant 0 : i32
    %c0_i32_0 = arith.constant 0 : i32
    %c0_i32_1 = arith.constant 0 : i32
    return %c0_i32, %c0_i32_0 : i32, i32
  }
  func.func @transform_7(%arg0: i32) -> (i32, i32) {
    %c0_i32 = arith.constant 0 : i32
    %c0_i32_0 = arith.constant 0 : i32
    %c0_i32_1 = arith.constant 0 : i32
    return %c0_i32, %c0_i32_0 : i32, i32
  }
  func.func @transform_8(%arg0: i32) -> (i32, i32) {
    %c0_i32 = arith.constant 0 : i32
    %c0_i32_0 = arith.constant 0 : i32
    %c0_i32_1 = arith.constant 0 : i32
    return %c0_i32, %c0_i32_0 : i32, i32
  }
  func.func @transform_9(%arg0: i32) -> (i32, i32) {
    %c0_i32 = arith.constant 0 : i32
    %c0_i32_0 = arith.constant 0 : i32
    %c0_i32_1 = arith.constant 0 : i32
    return %c0_i32, %c0_i32_0 : i32, i32
  }
  func.func @transform_10(%arg0: i32) -> (i32, i32) {
    %c0_i32 = arith.constant 0 : i32
    %c0_i32_0 = arith.constant 0 : i32
    %c0_i32_1 = arith.constant 0 : i32
    return %c0_i32, %c0_i32_0 : i32, i32
  }
  func.func @transform_11(%arg0: i32) -> (i32, i32) {
    %c0_i32 = arith.constant 0 : i32
    %c0_i32_0 = arith.constant 0 : i32
    %c0_i32_1 = arith.constant 0 : i32
    return %c0_i32, %c0_i32_0 : i32, i32
  }
  func.func @transform_12(%arg0: i32) -> (i32, i32) {
    %c0_i32 = arith.constant 0 : i32
    %c0_i32_0 = arith.constant 0 : i32
    %c0_i32_1 = arith.constant 0 : i32
    return %c0_i32, %c0_i32_0 : i32, i32
  }
  func.func @transform_13(%arg0: i32) -> (i32, i32) {
    %c0_i32 = arith.constant 0 : i32
    %c0_i32_0 = arith.constant 0 : i32
    %c0_i32_1 = arith.constant 0 : i32
    return %c0_i32, %c0_i32_0 : i32, i32
  }
  func.func @transform_14(%arg0: i32) -> (i32, i32) {
    %c0_i32 = arith.constant 0 : i32
    %c0_i32_0 = arith.constant 0 : i32
    %c0_i32_1 = arith.constant 0 : i32
    return %c0_i32, %c0_i32_0 : i32, i32
  }
  func.func @transform_15(%arg0: i32) -> (i32, i32) {
    %c0_i32 = arith.constant 0 : i32
    %c0_i32_0 = arith.constant 0 : i32
    %c0_i32_1 = arith.constant 0 : i32
    return %c0_i32, %c0_i32_0 : i32, i32
  }
  func.func @transform_16(%arg0: i32) -> (i32, i32) {
    %c0_i32 = arith.constant 0 : i32
    %c0_i32_0 = arith.constant 0 : i32
    %c0_i32_1 = arith.constant 0 : i32
    return %c0_i32, %c0_i32_0 : i32, i32
  }
  func.func @transform_17(%arg0: i32) -> (i32, i32) {
    %c0_i32 = arith.constant 0 : i32
    %c0_i32_0 = arith.constant 0 : i32
    %c0_i32_1 = arith.constant 0 : i32
    return %c0_i32, %c0_i32_0 : i32, i32
  }
  func.func @transform_18(%arg0: i32) -> (i32, i32) {
    %c0_i32 = arith.constant 0 : i32
    %c0_i32_0 = arith.constant 0 : i32
    %c0_i32_1 = arith.constant 0 : i32
    return %c0_i32, %c0_i32_0 : i32, i32
  }
  func.func @transform_19(%arg0: i32) -> (i32, i32) {
    %c0_i32 = arith.constant 0 : i32
    %c0_i32_0 = arith.constant 0 : i32
    %c0_i32_1 = arith.constant 0 : i32
    return %c0_i32, %c0_i32_0 : i32, i32
  }
  func.func @transform_20(%arg0: i32) -> (i32, i32) {
    %c0_i32 = arith.constant 0 : i32
    %c0_i32_0 = arith.constant 0 : i32
    %c0_i32_1 = arith.constant 0 : i32
    return %c0_i32, %c0_i32_0 : i32, i32
  }
  func.func @transform_21(%arg0: i32) -> (i32, i32) {
    %c0_i32 = arith.constant 0 : i32
    %c0_i32_0 = arith.constant 0 : i32
    %c0_i32_1 = arith.constant 0 : i32
    return %c0_i32, %c0_i32_0 : i32, i32
  }
  func.func @transform_22(%arg0: i32) -> (i32, i32) {
    %c0_i32 = arith.constant 0 : i32
    %c0_i32_0 = arith.constant 0 : i32
    return %arg0, %c0_i32 : i32, i32
  }
}

</mosaic_0001>

<llo_original>
// kernel: tpu_custom_call.1
$region0: #{tpu_custom_call.1}
  #allocation0 [shape = 'u32[]', space=smem, size = 0x4, offset = 0x4, fixed_abs, tag = 'smem constant byte address 0x4 - core index']
  #allocation1 [shape = 'u32[144,128]{1,0:T(1,128)}', space=vmem, size = 0x12000, scoped, tag = 'internal scratch']
  %s0 = inlined_call_operand.vmem [shape: f32[2,8,32], index: 0, kind: input, shape index: {}]
  %s1 = inlined_call_operand.hbm [shape: f32[2,8], index: 1, kind: input, shape index: {}]
  %s2 = inlined_call_operand.vmem [shape: bf16[32,32], index: 2, kind: input, shape index: {}]
  %s3 = inlined_call_operand.hbm [shape: f32[1,32], index: 3, kind: input, shape index: {}]
  %s4 = inlined_call_operand.vmem [shape: bf16[32,32], index: 4, kind: input, shape index: {}]
  %s5 = inlined_call_operand.hbm [shape: f32[1,32], index: 5, kind: input, shape index: {}]
  %s6 = inlined_call_operand.hbm [shape: bf16[32,32], index: 6, kind: input, shape index: {}]
  %s7 = inlined_call_operand.hbm [shape: f32[1,32], index: 7, kind: input, shape index: {}]
  %s8 = inlined_call_operand.hbm [shape: bf16[32,32], index: 8, kind: input, shape index: {}]
  %s9 = inlined_call_operand.hbm [shape: f32[1,32], index: 9, kind: input, shape index: {}]
  %s10 = inlined_call_operand.hbm [shape: f32[1,32], index: 10, kind: input, shape index: {}]
  %s11 = inlined_call_operand.hbm [shape: f32[1,32], index: 11, kind: input, shape index: {}]
  %s12 = inlined_call_operand.hbm [shape: bf16[32,64], index: 12, kind: input, shape index: {}]
  %s13 = inlined_call_operand.hbm [shape: f32[1,64], index: 13, kind: input, shape index: {}]
  %s14 = inlined_call_operand.vmem [shape: bf16[64,32], index: 14, kind: input, shape index: {}]
  %s15 = inlined_call_operand.hbm [shape: f32[1,32], index: 15, kind: input, shape index: {}]
  %s16 = inlined_call_operand.hbm [shape: f32[1,32], index: 16, kind: input, shape index: {}]
  %s17 = inlined_call_operand.hbm [shape: f32[1,32], index: 17, kind: input, shape index: {}]
  %s18 = inlined_call_operand.vmem [shape: bf16[32,128], index: 18, kind: input, shape index: {}]
  %s19 = inlined_call_operand.vmem [shape: f32[1,128], index: 19, kind: input, shape index: {}]
  %s20 = inlined_call_operand.hbm [shape: f32[128,128], index: 20, kind: input, shape index: {}]
  %s21 = inlined_call_operand.vmem [shape: f32[1,128], index: 21, kind: input, shape index: {}]
  %s22 = inlined_call_operand.hbm [shape: f32[2,128], index: 22, kind: output, shape index: {}]
  %s23 = sld [smem:[#allocation0]]
  $region158: #{tpu_custom_call.1} parent=0
    _
  %s25 = ssub.s32 1, %s23
  %s26 = scalar_select 0, %s25, %s23
  $region1: #{tpu_custom_call.1} parent=0
    #allocation2 [shape = 'u8[1024]{0}', space=vmem, size = 0x400, scoped, tag = 'input window, operand 1, single buffered']
    #allocation3 [shape = 's32[1]{0}', space=sflag, size = 0x4, scoped, tag = 'scoped memory for tpu_custom_call.1']
    #allocation4 [shape = 's32[1]{0}', space=sflag, size = 0x4, scoped, tag = 'scoped memory for tpu_custom_call.1']
    #allocation5 [shape = 'u8[512]{0}', space=vmem, size = 0x400, scoped, tag = 'input window, operand 3, single buffered']
    #allocation6 [shape = 's32[1]{0}', space=sflag, size = 0x4, scoped, tag = 'scoped memory for tpu_custom_call.1']
    #allocation7 [shape = 'u8[512]{0}', space=vmem, size = 0x400, scoped, tag = 'input window, operand 5, single buffered']
    #allocation8 [shape = 'u8[8192]{0}', space=vmem, size = 0x2000, scoped, tag = 'input window, operand 6, single buffered']
    #allocation9 [shape = 's32[1]{0}', space=sflag, size = 0x4, scoped, tag = 'scoped memory for tpu_custom_call.1']
    #allocation10 [shape = 'u8[512]{0}', space=vmem, size = 0x400, scoped, tag = 'input window, operand 7, single buffered']
    #allocation11 [shape = 'u8[8192]{0}', space=vmem, size = 0x2000, scoped, tag = 'input window, operand 8, single buffered']
    #allocation12 [shape = 's32[1]{0}', space=sflag, size = 0x4, scoped, tag = 'scoped memory for tpu_custom_call.1']
    #allocation13 [shape = 'u8[512]{0}', space=vmem, size = 0x400, scoped, tag = 'input window, operand 9, single buffered']
    #allocation14 [shape = 'u8[512]{0}', space=vmem, size = 0x400, scoped, tag = 'input window, operand 10, single buffered']
    #allocation15 [shape = 's32[1]{0}', space=sflag, size = 0x4, scoped, tag = 'scoped memory for tpu_custom_call.1']
    #allocation16 [shape = 'u8[512]{0}', space=vmem, size = 0x400, scoped, tag = 'input window, operand 11, single buffered']
    #allocation17 [shape = 'u8[8192]{0}', space=vmem, size = 0x2000, scoped, tag = 'input window, operand 12, single buffered']
    #allocation18 [shape = 's32[1]{0}', space=sflag, size = 0x4, scoped, tag = 'scoped memory for tpu_custom_call.1']
    #allocation19 [shape = 'u8[512]{0}', space=vmem, size = 0x400, scoped, tag = 'input window, operand 13, single buffered']
    #allocation20 [shape = 'u8[512]{0}', space=vmem, size = 0x400, scoped, tag = 'input window, operand 15, single buffered']
    #allocation21 [shape = 's32[1]{0}', space=sflag, size = 0x4, scoped, tag = 'scoped memory for tpu_custom_call.1']
    #allocation22 [shape = 'u8[512]{0}', space=vmem, size = 0x400, scoped, tag = 'input window, operand 16, single buffered']
    #allocation23 [shape = 'u8[512]{0}', space=vmem, size = 0x400, scoped, tag = 'input window, operand 17, single buffered']
    #allocation24 [shape = 's32[1]{0}', space=sflag, size = 0x4, scoped, tag = 'scoped memory for tpu_custom_call.1']
    #allocation25 [shape = 'u8[65536]{0}', space=vmem, size = 0x10000, scoped, tag = 'input window, operand 20, single buffered']
    #allocation26 [shape = 'u8[1024]{0}', space=vmem, size = 0x400, scoped, tag = 'output window, operand 0, single buffered']
    %27 = vsyncpa [#allocation3], 0
    %28 = vsyncpa [#allocation6], 0
    %29 = vsyncpa [#allocation9], 0
    %30 = vsyncpa [#allocation12], 0
    %31 = vsyncpa [#allocation15], 0
    %32 = vsyncpa [#allocation18], 0
    %33 = vsyncpa [#allocation21], 0
    %34 = vsyncpa [#allocation24], 0
    %35 = vsyncpa [#allocation4], 0
    // Predicated region
    $region2: #{tpu_custom_call.1} parent=1 // pred_check
      _
    $region3: #{tpu_custom_call.1} parent=1 // pred_check_branch
      %37 = sbr.rel (0) target = $region5
    $region4: #{tpu_custom_call.1} parent=1 // pred_region
      _
    $region5: #{tpu_custom_call.1} parent=1 // pred_fallthru
      _
    // Predicated region
    $region6: #{tpu_custom_call.1} parent=1 // pred_check
      _
    $region7: #{tpu_custom_call.1} parent=1 // pred_check_branch
      %39 = sbr.rel (0) target = $region9
    $region8: #{tpu_custom_call.1} parent=1 // pred_region
      %s41 = ssub.s32 32, 32
      %42 = vsyncadd [#allocation3], %s41
      %s44 = sshll.u32 [#allocation2], 4
      %s45 = int_to_ptr.vmem [resolvable:$true] %s44
      %47 = dma.hbm_to_vmem [thread:$0]  %s1, 32, %s45, [#allocation3]
    $region9: #{tpu_custom_call.1} parent=1 // pred_fallthru
      _
    // Predicated region
    $region10: #{tpu_custom_call.1} parent=1 // pred_check
      _
    $region11: #{tpu_custom_call.1} parent=1 // pred_check_branch
      %49 = sbr.rel (0) target = $region13
    $region12: #{tpu_custom_call.1} parent=1 // pred_region
      _
    $region13: #{tpu_custom_call.1} parent=1 // pred_fallthru
      _
    // Predicated region
    $region14: #{tpu_custom_call.1} parent=1 // pred_check
      _
    $region15: #{tpu_custom_call.1} parent=1 // pred_check_branch
      %51 = sbr.rel (0) target = $region17
    $region16: #{tpu_custom_call.1} parent=1 // pred_region
      %s53 = ssub.s32 16, 16
      %54 = vsyncadd [#allocation6], %s53
      %s56 = sshll.u32 [#allocation5], 4
      %s57 = int_to_ptr.vmem [resolvable:$true] %s56
      %59 = dma.hbm_to_vmem [thread:$0]  %s3, 16, %s57, [#allocation6]
    $region17: #{tpu_custom_call.1} parent=1 // pred_fallthru
      _
    // Predicated region
    $region18: #{tpu_custom_call.1} parent=1 // pred_check
      _
    $region19: #{tpu_custom_call.1} parent=1 // pred_check_branch
      %61 = sbr.rel (0) target = $region21
    $region20: #{tpu_custom_call.1} parent=1 // pred_region
      _
    $region21: #{tpu_custom_call.1} parent=1 // pred_fallthru
      _
    // Predicated region
    $region22: #{tpu_custom_call.1} parent=1 // pred_check
      _
    $region23: #{tpu_custom_call.1} parent=1 // pred_check_branch
      %63 = sbr.rel (0) target = $region25
    $region24: #{tpu_custom_call.1} parent=1 // pred_region
      %s65 = ssub.s32 16, 16
      %66 = vsyncadd [#allocation6], %s65
      %s68 = sshll.u32 [#allocation7], 4
      %s69 = int_to_ptr.vmem [resolvable:$true] %s68
      %71 = dma.hbm_to_vmem [thread:$0]  %s5, 16, %s69, [#allocation6]
    $region25: #{tpu_custom_call.1} parent=1 // pred_fallthru
      _
    // Predicated region
    $region26: #{tpu_custom_call.1} parent=1 // pred_check
      _
    $region27: #{tpu_custom_call.1} parent=1 // pred_check_branch
      %73 = sbr.rel (0) target = $region29
    $region28: #{tpu_custom_call.1} parent=1 // pred_region
      %s75 = ssub.s32 256, 256
      %76 = vsyncadd [#allocation9], %s75
      %s77 = sshll.u32 [#allocation8], 4
      %s78 = int_to_ptr.vmem [resolvable:$true] %s77
      %83 = dma.hbm_to_vmem [thread:$0]  %s6, 256, %s78, [#allocation9], 64, 64, 4
    $region29: #{tpu_custom_call.1} parent=1 // pred_fallthru
      _
    // Predicated region
    $region30: #{tpu_custom_call.1} parent=1 // pred_check
      _
    $region31: #{tpu_custom_call.1} parent=1 // pred_check_branch
      %85 = sbr.rel (0) target = $region33
    $region32: #{tpu_custom_call.1} parent=1 // pred_region
      %s87 = ssub.s32 16, 16
      %88 = vsyncadd [#allocation9], %s87
      %s90 = sshll.u32 [#allocation10], 4
      %s91 = int_to_ptr.vmem [resolvable:$true] %s90
      %93 = dma.hbm_to_vmem [thread:$0]  %s7, 16, %s91, [#allocation9]
    $region33: #{tpu_custom_call.1} parent=1 // pred_fallthru
      _
    // Predicated region
    $region34: #{tpu_custom_call.1} parent=1 // pred_check
      _
    $region35: #{tpu_custom_call.1} parent=1 // pred_check_branch
      %95 = sbr.rel (0) target = $region37
    $region36: #{tpu_custom_call.1} parent=1 // pred_region
      %s97 = ssub.s32 256, 256
      %98 = vsyncadd [#allocation12], %s97
      %s99 = sshll.u32 [#allocation11], 4
      %s100 = int_to_ptr.vmem [resolvable:$true] %s99
      %105 = dma.hbm_to_vmem [thread:$0]  %s8, 256, %s100, [#allocation12], 64, 64, 4
    $region37: #{tpu_custom_call.1} parent=1 // pred_fallthru
      _
    // Predicated region
    $region38: #{tpu_custom_call.1} parent=1 // pred_check
      _
    $region39: #{tpu_custom_call.1} parent=1 // pred_check_branch
      %107 = sbr.rel (0) target = $region41
    $region40: #{tpu_custom_call.1} parent=1 // pred_region
      %s109 = ssub.s32 16, 16
      %110 = vsyncadd [#allocation12], %s109
      %s112 = sshll.u32 [#allocation13], 4
      %s113 = int_to_ptr.vmem [resolvable:$true] %s112
      %115 = dma.hbm_to_vmem [thread:$0]  %s9, 16, %s113, [#allocation12]
    $region41: #{tpu_custom_call.1} parent=1 // pred_fallthru
      _
    // Predicated region
    $region42: #{tpu_custom_call.1} parent=1 // pred_check
      _
    $region43: #{tpu_custom_call.1} parent=1 // pred_check_branch
      %117 = sbr.rel (0) target = $region45
    $region44: #{tpu_custom_call.1} parent=1 // pred_region
      %s119 = ssub.s32 16, 16
      %120 = vsyncadd [#allocation15], %s119
      %s122 = sshll.u32 [#allocation14], 4
      %s123 = int_to_ptr.vmem [resolvable:$true] %s122
      %125 = dma.hbm_to_vmem [thread:$0]  %s10, 16, %s123, [#allocation15]
    $region45: #{tpu_custom_call.1} parent=1 // pred_fallthru
      _
    // Predicated region
    $region46: #{tpu_custom_call.1} parent=1 // pred_check
      _
    $region47: #{tpu_custom_call.1} parent=1 // pred_check_branch
      %127 = sbr.rel (0) target = $region49
    $region48: #{tpu_custom_call.1} parent=1 // pred_region
      %s129 = ssub.s32 16, 16
      %130 = vsyncadd [#allocation15], %s129
      %s132 = sshll.u32 [#allocation16], 4
      %s133 = int_to_ptr.vmem [resolvable:$true] %s132
      %135 = dma.hbm_to_vmem [thread:$0]  %s11, 16, %s133, [#allocation15]
    $region49: #{tpu_custom_call.1} parent=1 // pred_fallthru
      _
    // Predicated region
    $region50: #{tpu_custom_call.1} parent=1 // pred_check
      _
    $region51: #{tpu_custom_call.1} parent=1 // pred_check_branch
      %137 = sbr.rel (0) target = $region53
    $region52: #{tpu_custom_call.1} parent=1 // pred_region
      %s139 = ssub.s32 256, 256
      %140 = vsyncadd [#allocation18], %s139
      %s141 = sshll.u32 [#allocation17], 4
      %s142 = int_to_ptr.vmem [resolvable:$true] %s141
      %147 = dma.hbm_to_vmem [thread:$0]  %s12, 256, %s142, [#allocation18], 64, 64, 4
    $region53: #{tpu_custom_call.1} parent=1 // pred_fallthru
      _
    // Predicated region
    $region54: #{tpu_custom_call.1} parent=1 // pred_check
      _
    $region55: #{tpu_custom_call.1} parent=1 // pred_check_branch
      %149 = sbr.rel (0) target = $region57
    $region56: #{tpu_custom_call.1} parent=1 // pred_region
      %s151 = ssub.s32 16, 16
      %152 = vsyncadd [#allocation18], %s151
      %s154 = sshll.u32 [#allocation19], 4
      %s155 = int_to_ptr.vmem [resolvable:$true] %s154
      %157 = dma.hbm_to_vmem [thread:$0]  %s13, 16, %s155, [#allocation18]
    $region57: #{tpu_custom_call.1} parent=1 // pred_fallthru
      _
    // Predicated region
    $region58: #{tpu_custom_call.1} parent=1 // pred_check
      _
    $region59: #{tpu_custom_call.1} parent=1 // pred_check_branch
      %159 = sbr.rel (0) target = $region61
    $region60: #{tpu_custom_call.1} parent=1 // pred_region
      _
    $region61: #{tpu_custom_call.1} parent=1 // pred_fallthru
      _
    // Predicated region
    $region62: #{tpu_custom_call.1} parent=1 // pred_check
      _
    $region63: #{tpu_custom_call.1} parent=1 // pred_check_branch
      %161 = sbr.rel (0) target = $region65
    $region64: #{tpu_custom_call.1} parent=1 // pred_region
      %s163 = ssub.s32 16, 16
      %164 = vsyncadd [#allocation21], %s163
      %s166 = sshll.u32 [#allocation20], 4
      %s167 = int_to_ptr.vmem [resolvable:$true] %s166
      %169 = dma.hbm_to_vmem [thread:$0]  %s15, 16, %s167, [#allocation21]
    $region65: #{tpu_custom_call.1} parent=1 // pred_fallthru
      _
    // Predicated region
    $region66: #{tpu_custom_call.1} parent=1 // pred_check
      _
    $region67: #{tpu_custom_call.1} parent=1 // pred_check_branch
      %171 = sbr.rel (0) target = $region69
    $region68: #{tpu_custom_call.1} parent=1 // pred_region
      %s173 = ssub.s32 16, 16
      %174 = vsyncadd [#allocation21], %s173
      %s176 = sshll.u32 [#allocation22], 4
      %s177 = int_to_ptr.vmem [resolvable:$true] %s176
      %179 = dma.hbm_to_vmem [thread:$0]  %s16, 16, %s177, [#allocation21]
    $region69: #{tpu_custom_call.1} parent=1 // pred_fallthru
      _
    // Predicated region
    $region70: #{tpu_custom_call.1} parent=1 // pred_check
      _
    $region71: #{tpu_custom_call.1} parent=1 // pred_check_branch
      %181 = sbr.rel (0) target = $region73
    $region72: #{tpu_custom_call.1} parent=1 // pred_region
      %s183 = ssub.s32 16, 16
      %184 = vsyncadd [#allocation24], %s183
      %s186 = sshll.u32 [#allocation23], 4
      %s187 = int_to_ptr.vmem [resolvable:$true] %s186
      %189 = dma.hbm_to_vmem [thread:$0]  %s17, 16, %s187, [#allocation24]
    $region73: #{tpu_custom_call.1} parent=1 // pred_fallthru
      _
    // Predicated region
    $region74: #{tpu_custom_call.1} parent=1 // pred_check
      _
    $region75: #{tpu_custom_call.1} parent=1 // pred_check_branch
      %191 = sbr.rel (0) target = $region77
    $region76: #{tpu_custom_call.1} parent=1 // pred_region
      _
    $region77: #{tpu_custom_call.1} parent=1 // pred_fallthru
      _
    // Predicated region
    $region78: #{tpu_custom_call.1} parent=1 // pred_check
      _
    $region79: #{tpu_custom_call.1} parent=1 // pred_check_branch
      %193 = sbr.rel (0) target = $region81
    $region80: #{tpu_custom_call.1} parent=1 // pred_region
      _
    $region81: #{tpu_custom_call.1} parent=1 // pred_fallthru
      _
    // Predicated region
    $region82: #{tpu_custom_call.1} parent=1 // pred_check
      _
    $region83: #{tpu_custom_call.1} parent=1 // pred_check_branch
      %195 = sbr.rel (0) target = $region85
    $region84: #{tpu_custom_call.1} parent=1 // pred_region
      %s197 = ssub.s32 2048, 2048
      %198 = vsyncadd [#allocation24], %s197
      %s199 = sshll.u32 [#allocation25], 4
      %s200 = int_to_ptr.vmem [resolvable:$true] %s199
      %205 = dma.hbm_to_vmem [thread:$0]  %s20, 2048, %s200, [#allocation24], 128, 128, 8
    $region85: #{tpu_custom_call.1} parent=1 // pred_fallthru
      _
    // Predicated region
    $region86: #{tpu_custom_call.1} parent=1 // pred_check
      _
    $region87: #{tpu_custom_call.1} parent=1 // pred_check_branch
      %207 = sbr.rel (0) target = $region89
    $region88: #{tpu_custom_call.1} parent=1 // pred_region
      _
    $region89: #{tpu_custom_call.1} parent=1 // pred_fallthru
      _
    // Predicated region
    $region90: #{tpu_custom_call.1} parent=1 // pred_check
      _
    $region91: #{tpu_custom_call.1} parent=1 // pred_check_branch
      %209 = sbr.rel (0) target = $region93
    $region92: #{tpu_custom_call.1} parent=1 // pred_region
      %210 = dma.done [#allocation3], 32
    $region93: #{tpu_custom_call.1} parent=1 // pred_fallthru
      _
    // Predicated region
    $region94: #{tpu_custom_call.1} parent=1 // pred_check
      _
    $region95: #{tpu_custom_call.1} parent=1 // pred_check_branch
      %212 = sbr.rel (0) target = $region97
    $region96: #{tpu_custom_call.1} parent=1 // pred_region
      %213 = dma.done [#allocation6], 16
    $region97: #{tpu_custom_call.1} parent=1 // pred_fallthru
      _
    // Predicated region
    $region98: #{tpu_custom_call.1} parent=1 // pred_check
      _
    $region99: #{tpu_custom_call.1} parent=1 // pred_check_branch
      %215 = sbr.rel (0) target = $region101
    $region100: #{tpu_custom_call.1} parent=1 // pred_region
      %216 = dma.done [#allocation6], 16
    $region101: #{tpu_custom_call.1} parent=1 // pred_fallthru
      _
    // Predicated region
    $region102: #{tpu_custom_call.1} parent=1 // pred_check
      _
    $region103: #{tpu_custom_call.1} parent=1 // pred_check_branch
      %218 = sbr.rel (0) target = $region105
    $region104: #{tpu_custom_call.1} parent=1 // pred_region
      %219 = dma.done [#allocation9], 256
    $region105: #{tpu_custom_call.1} parent=1 // pred_fallthru
      _
    // Predicated region
    $region106: #{tpu_custom_call.1} parent=1 // pred_check
      _
    $region107: #{tpu_custom_call.1} parent=1 // pred_check_branch
      %221 = sbr.rel (0) target = $region109
    $region108: #{tpu_custom_call.1} parent=1 // pred_region
      %222 = dma.done [#allocation9], 16
    $region109: #{tpu_custom_call.1} parent=1 // pred_fallthru
      _
    // Predicated region
    $region110: #{tpu_custom_call.1} parent=1 // pred_check
      _
    $region111: #{tpu_custom_call.1} parent=1 // pred_check_branch
      %224 = sbr.rel (0) target = $region113
    $region112: #{tpu_custom_call.1} parent=1 // pred_region
      %225 = dma.done [#allocation12], 256
    $region113: #{tpu_custom_call.1} parent=1 // pred_fallthru
      _
    // Predicated region
    $region114: #{tpu_custom_call.1} parent=1 // pred_check
      _
    $region115: #{tpu_custom_call.1} parent=1 // pred_check_branch
      %227 = sbr.rel (0) target = $region117
    $region116: #{tpu_custom_call.1} parent=1 // pred_region
      %228 = dma.done [#allocation12], 16
    $region117: #{tpu_custom_call.1} parent=1 // pred_fallthru
      _
    // Predicated region
    $region118: #{tpu_custom_call.1} parent=1 // pred_check
      _
    $region119: #{tpu_custom_call.1} parent=1 // pred_check_branch
      %230 = sbr.rel (0) target = $region121
    $region120: #{tpu_custom_call.1} parent=1 // pred_region
      %231 = dma.done [#allocation15], 16
    $region121: #{tpu_custom_call.1} parent=1 // pred_fallthru
      _
    // Predicated region
    $region122: #{tpu_custom_call.1} parent=1 // pred_check
      _
    $region123: #{tpu_custom_call.1} parent=1 // pred_check_branch
      %233 = sbr.rel (0) target = $region125
    $region124: #{tpu_custom_call.1} parent=1 // pred_region
      %234 = dma.done [#allocation15], 16
    $region125: #{tpu_custom_call.1} parent=1 // pred_fallthru
      _
    // Predicated region
    $region126: #{tpu_custom_call.1} parent=1 // pred_check
      _
    $region127: #{tpu_custom_call.1} parent=1 // pred_check_branch
      %236 = sbr.rel (0) target = $region129
    $region128: #{tpu_custom_call.1} parent=1 // pred_region
      %237 = dma.done [#allocation18], 256
    $region129: #{tpu_custom_call.1} parent=1 // pred_fallthru
      _
    // Predicated region
    $region130: #{tpu_custom_call.1} parent=1 // pred_check
      _
    $region131: #{tpu_custom_call.1} parent=1 // pred_check_branch
      %239 = sbr.rel (0) target = $region133
    $region132: #{tpu_custom_call.1} parent=1 // pred_region
      %240 = dma.done [#allocation18], 16
    $region133: #{tpu_custom_call.1} parent=1 // pred_fallthru
      _
    // Predicated region
    $region134: #{tpu_custom_call.1} parent=1 // pred_check
      _
    $region135: #{tpu_custom_call.1} parent=1 // pred_check_branch
      %242 = sbr.rel (0) target = $region137
    $region136: #{tpu_custom_call.1} parent=1 // pred_region
      %243 = dma.done [#allocation21], 16
    $region137: #{tpu_custom_call.1} parent=1 // pred_fallthru
      _
    // Predicated region
    $region138: #{tpu_custom_call.1} parent=1 // pred_check
      _
    $region139: #{tpu_custom_call.1} parent=1 // pred_check_branch
      %245 = sbr.rel (0) target = $region141
    $region140: #{tpu_custom_call.1} parent=1 // pred_region
      %246 = dma.done [#allocation21], 16
    $region141: #{tpu_custom_call.1} parent=1 // pred_fallthru
      _
    // Predicated region
    $region142: #{tpu_custom_call.1} parent=1 // pred_check
      _
    $region143: #{tpu_custom_call.1} parent=1 // pred_check_branch
      %248 = sbr.rel (0) target = $region145
    $region144: #{tpu_custom_call.1} parent=1 // pred_region
      %249 = dma.done [#allocation24], 16
    $region145: #{tpu_custom_call.1} parent=1 // pred_fallthru
      _
    // Predicated region
    $region146: #{tpu_custom_call.1} parent=1 // pred_check
      _
    $region147: #{tpu_custom_call.1} parent=1 // pred_check_branch
      %251 = sbr.rel (0) target = $region149
    $region148: #{tpu_custom_call.1} parent=1 // pred_region
      %252 = dma.done [#allocation24], 2048
    $region149: #{tpu_custom_call.1} parent=1 // pred_fallthru
      _
    %v254 = vld [vmem:[%s0] sm:$0xff]
    %v255 = vld [vmem:[%s0 + $0x8] sm:$0xff]
    %v256 = vpack.c.bf16 %v255, %v254
    %v257 = vld [vmem:[%s4] sm:$0xf]
    %v258 = vld [vmem:[%s4 + $0x4] sm:$0xf]
    %v259 = vld [vmem:[%s4 + $0x8] sm:$0xf]
    %v260 = vld [vmem:[%s4 + $0xc] sm:$0xf]
    %v261 = vld [vmem:[#allocation7] sm:$0x1]
    %v263 = vlaneseq
    %v264 = vshrl.u32 %v263, 7
    %v265 = vsub.s32 0, %v264
    %v266 = vrot.slane %v261, %v265
    %v272 = vunpack.c.l.b16 %v257
    %v273 = vunpack.c.l.b16 %v258
    %v274 = vunpack.c.l.b16 %v259
    %v275 = vunpack.c.l.b16 %v260
    %v276 = vpack.c.b16 %v273, %v272
    %v277 = vpack.c.b16 %v275, %v274
    %vm280 = vcmask 261120
    %v282 = vsel %vm280, %v256, 0
    %284 = vmatprep.subr.bf16.mxu0 0
    %285 = vmatpush1.bf16.msra.mxu0 0
    %286 = vmatprep.subr.bf16.mxu0 0
    %287 = vmatpush1.bf16.msra.mxu0 0
    %288 = vmatprep.subr.bf16.mxu0 0
    %289 = vmatpush1.bf16.msra.mxu0 0
    %290 = vmatprep.subr.bf16.mxu0 0
    %291 = vmatpush1.bf16.msra.mxu0 0
    %292 = vmatprep.subr.bf16.mxu0 0
    %293 = vmatpush1.bf16.msra.mxu0 0
    %294 = vmatprep.subr.bf16.mxu0 0
    %295 = vmatpush1.bf16.msra.mxu0 0
    %296 = vmatprep.subr.bf16.mxu0 0
    %297 = vmatpush1.bf16.msra.mxu0 %v277
    %298 = vmatprep.subr.bf16.mxu0 0
    %299 = vmatpush1.bf16.msra.mxu0 %v276
    %300 = vmatprep.subr.bf16.mxu0 0
    %301 = vmatpush2.bf16.msra.mxu0 0
    %302 = vmatprep.subr.bf16.mxu0 0
    %303 = vmatpush2.bf16.msra.mxu0 0
    %304 = vmatprep.subr.bf16.mxu0 0
    %305 = vmatpush2.bf16.msra.mxu0 0
    %306 = vmatprep.subr.bf16.mxu0 0
    %307 = vmatpush2.bf16.msra.mxu0 0
    %308 = vmatprep.subr.bf16.mxu0 0
    %309 = vmatpush2.bf16.msra.mxu0 0
    %310 = vmatprep.subr.bf16.mxu0 0
    %311 = vmatpush2.bf16.msra.mxu0 0
    %312 = vmatprep.subr.bf16.mxu0 0
    %313 = vmatpush2.bf16.msra.mxu0 0
    %314 = vmatprep.subr.bf16.mxu0 0
    %315 = vmatpush2.bf16.msra.mxu0 0
    %316 = vmatprep.mubr.bf16.mxu0 0
    %317 = vmatmul.mubr.bf16.gmra.mxu0 %v282
    %v318 = vpop.f32.mrf.mxu0
    %v319 = vadd.f32 %v266, %v318
    %v320 = vpop.f32.mrf.mxu0
    %v321 = vpop.f32.mrf.mxu0
    %v322 = vadd.f32 %v266, %v321
    %v323 = vpop.f32.mrf.mxu0
    %324 = vdwg.mxu0
    %v325 = vld [vmem:[#allocation8] sm:$0xf]
    %v326 = vld [vmem:[#allocation8 + $0x4] sm:$0xf]
    %v327 = vld [vmem:[#allocation8 + $0x8] sm:$0xf]
    %v328 = vld [vmem:[#allocation8 + $0xc] sm:$0xf]
    %v329 = vld [vmem:[#allocation10] sm:$0x1]
    %v331 = vlaneseq
    %v332 = vshrl.u32 %v331, 7
    %v333 = vsub.s32 0, %v332
    %v334 = vrot.slane %v329, %v333
    %v340 = vunpack.c.l.b16 %v325
    %v341 = vunpack.c.l.b16 %v326
    %v342 = vunpack.c.l.b16 %v327
    %v343 = vunpack.c.l.b16 %v328
    %v344 = vpack.c.b16 %v341, %v340
    %v345 = vpack.c.b16 %v343, %v342
    %348 = vmatprep.subr.bf16.mxu0 0
    %349 = vmatpush1.bf16.msra.mxu0 0
    %350 = vmatprep.subr.bf16.mxu0 0
    %351 = vmatpush1.bf16.msra.mxu0 0
    %352 = vmatprep.subr.bf16.mxu0 0
    %353 = vmatpush1.bf16.msra.mxu0 0
    %354 = vmatprep.subr.bf16.mxu0 0
    %355 = vmatpush1.bf16.msra.mxu0 0
    %356 = vmatprep.subr.bf16.mxu0 0
    %357 = vmatpush1.bf16.msra.mxu0 0
    %358 = vmatprep.subr.bf16.mxu0 0
    %359 = vmatpush1.bf16.msra.mxu0 0
    %360 = vmatprep.subr.bf16.mxu0 0
    %361 = vmatpush1.bf16.msra.mxu0 %v345
    %362 = vmatprep.subr.bf16.mxu0 0
    %363 = vmatpush1.bf16.msra.mxu0 %v344
    %364 = vmatprep.subr.bf16.mxu0 0
    %365 = vmatpush2.bf16.msra.mxu0 0
    %366 = vmatprep.subr.bf16.mxu0 0
    %367 = vmatpush2.bf16.msra.mxu0 0
    %368 = vmatprep.subr.bf16.mxu0 0
    %369 = vmatpush2.bf16.msra.mxu0 0
    %370 = vmatprep.subr.bf16.mxu0 0
    %371 = vmatpush2.bf16.msra.mxu0 0
    %372 = vmatprep.subr.bf16.mxu0 0
    %373 = vmatpush2.bf16.msra.mxu0 0
    %374 = vmatprep.subr.bf16.mxu0 0
    %375 = vmatpush2.bf16.msra.mxu0 0
    %376 = vmatprep.subr.bf16.mxu0 0
    %377 = vmatpush2.bf16.msra.mxu0 0
    %378 = vmatprep.subr.bf16.mxu0 0
    %379 = vmatpush2.bf16.msra.mxu0 0
    %380 = vmatprep.mubr.bf16.mxu0 0
    %381 = vmatmul.mubr.bf16.gmra.mxu0 %v282
    %v382 = vpop.f32.mrf.mxu0
    %v383 = vadd.f32 %v334, %v382
    %v384 = vpop.f32.mrf.mxu0
    %v385 = vpop.f32.mrf.mxu0
    %v386 = vadd.f32 %v334, %v385
    %v387 = vpop.f32.mrf.mxu0
    %388 = vdwg.mxu0
    %v389 = vpack.c.bf16 %v254, %v254
    %v390 = vpack.c.bf16 %v255, %v255
    %v391 = vld [vmem:[%s2] sm:$0xf]
    %v392 = vld [vmem:[%s2 + $0x4] sm:$0xf]
    %v393 = vld [vmem:[%s2 + $0x8] sm:$0xf]
    %v394 = vld [vmem:[%s2 + $0xc] sm:$0xf]
    %v395 = vld [vmem:[#allocation5] sm:$0x1]
    %v397 = vlaneseq
    %v398 = vshrl.u32 %v397, 7
    %v399 = vsub.s32 0, %v398
    %v400 = vrot.slane %v395, %v399
    %v404 = vunpack.c.l.b16 %v389
    %v405 = vunpack.c.l.b16 %v390
    %v406 = vrot.slane %v405, 7
    %vm407 = vcmask 1041409
    %v408 = vsel %vm407, %v406, %v404
    %v409 = vpack.c.b16 %v408, %v408
    %v414 = vunpack.c.l.b16 %v391
    %v415 = vunpack.c.l.b16 %v392
    %v416 = vunpack.c.l.b16 %v393
    %v417 = vunpack.c.l.b16 %v394
    %v418 = vpack.c.b16 %v415, %v414
    %v419 = vpack.c.b16 %v417, %v416
    %v423 = vsel %vm280, %v409, 0
    %425 = vmatprep.subr.bf16.mxu0 0
    %426 = vmatpush1.bf16.msra.mxu0 0
    %427 = vmatprep.subr.bf16.mxu0 0
    %428 = vmatpush1.bf16.msra.mxu0 0
    %429 = vmatprep.subr.bf16.mxu0 0
    %430 = vmatpush1.bf16.msra.mxu0 0
    %431 = vmatprep.subr.bf16.mxu0 0
    %432 = vmatpush1.bf16.msra.mxu0 0
    %433 = vmatprep.subr.bf16.mxu0 0
    %434 = vmatpush1.bf16.msra.mxu0 0
    %435 = vmatprep.subr.bf16.mxu0 0
    %436 = vmatpush1.bf16.msra.mxu0 0
    %437 = vmatprep.subr.bf16.mxu0 0
    %438 = vmatpush1.bf16.msra.mxu0 %v419
    %439 = vmatprep.subr.bf16.mxu0 0
    %440 = vmatpush1.bf16.msra.mxu0 %v418
    %441 = vmatprep.subr.bf16.mxu0 0
    %442 = vmatpush2.bf16.msra.mxu0 0
    %443 = vmatprep.subr.bf16.mxu0 0
    %444 = vmatpush2.bf16.msra.mxu0 0
    %445 = vmatprep.subr.bf16.mxu0 0
    %446 = vmatpush2.bf16.msra.mxu0 0
    %447 = vmatprep.subr.bf16.mxu0 0
    %448 = vmatpush2.bf16.msra.mxu0 0
    %449 = vmatprep.subr.bf16.mxu0 0
    %450 = vmatpush2.bf16.msra.mxu0 0
    %451 = vmatprep.subr.bf16.mxu0 0
    %452 = vmatpush2.bf16.msra.mxu0 0
    %453 = vmatprep.subr.bf16.mxu0 0
    %454 = vmatpush2.bf16.msra.mxu0 0
    %455 = vmatprep.subr.bf16.mxu0 0
    %456 = vmatpush2.bf16.msra.mxu0 0
    %457 = vmatprep.mubr.bf16.mxu0 0
    %458 = vmatmul.mubr.bf16.gmra.mxu0 %v423
    %v459 = vpop.f32.mrf.mxu0
    %v460 = vadd.f32 %v400, %v459
    %v461 = vpop.f32.mrf.mxu0
    %v462 = vpop.f32.mrf.mxu0
    %v463 = vpop.f32.mrf.mxu0
    %464 = vdwg.mxu0
    %v467 = vunpack.c.l.s4 1966171168
    %v468 = vunpack.c.0.s8 %v467
    %v469 = vlaneseq
    %v470 = vshrl.u32 %v469, 7
    %v471 = vsub.s32 %v468, %v470
    %v472 = vrot.slane %v460, %v471
    %v473 = vcombine.high %v472, %v472
    %v475 = vunpack.c.l.s4 1966171168
    %v476 = vunpack.c.0.s8 %v475
    %v477 = vlaneseq
    %v478 = vshrl.u32 %v477, 7
    %v479 = vsub.s32 %v476, %v478
    %v480 = vrot.slane %v472, %v479
    %v482 = vunpack.c.l.s4 1966171168
    %v483 = vunpack.c.0.s8 %v482
    %v484 = vlaneseq
    %v485 = vshrl.u32 %v484, 7
    %v486 = vsub.s32 %v483, %v485
    %v487 = vrot.slane %v473, %v486
    %v488 = vlaneseq
    %v489 = vshrl.u32 %v488, 7
    %v490 = vsub.s32 0, %v489
    %v491 = vrot.slane %v480, %v490
    %v492 = vlaneseq
    %v493 = vshrl.u32 %v492, 7
    %v494 = vsub.s32 0, %v493
    %v495 = vrot.slane %v487, %v494
    %v498 = vmul.f32 %v491, %v319
    %v499 = vmul.f32 %v495, %v322
    %v500 = vsel %vm280, %v498, 0.0
    %501 = vadd.xlane.f32.xlu0 %v500
    %v502 = vpop.xlane.xlu0 %501
    %v503 = vsel %vm280, %v499, 0.0
    %504 = vadd.xlane.f32.xlu0 %v503
    %v505 = vpop.xlane.xlu0 %504
    %v506 = vmul.f32 %v502, 0.17677669
    %v507 = vmul.f32 %v505, 0.17677669
    %v508 = vld [vmem:[#allocation2] sm:$0x3]
    %v509 = vsub.f32 %v508, 1.0
    %v510 = vmul.f32 %v509, 1e+09
    %v512 = vlaneseq
    %v513 = vshrl.u32 %v512, 7
    %v514 = vsub.s32 0, %v513
    %v515 = vrot.slane %v510, %v514
    %517 = vbcast.lane.b32.xlu0 %v515, 256
    %v518 = vpop.permute.xlu0 %517
    %v519 = vlaneseq
    %v520 = vshrl.u32 %v519, 7
    %v521 = vsub.s32 1, %v520
    %v522 = vrot.slane %v510, %v521
    %524 = vbcast.lane.b32.xlu0 %v522, 256
    %v525 = vpop.permute.xlu0 %524
    %v528 = vadd.f32 %v506, %v518
    %v529 = vadd.f32 %v507, %v525
    %532 = vset.pattern.permute.xlu0 0
    %533 = vperm.xlu0 %532, %v528
    %v534 = vpop.permute.xlu0 %533
    %535 = vset.pattern.permute.xlu0 0
    %536 = vperm.xlu0 %535, %v529
    %v537 = vpop.permute.xlu0 %536
    %v538 = vlaneseq
    %v539 = vand.u32 %v538, 127
    %v540 = vlaneseq
    %v541 = vshrl.u32 %v540, 7
    %v542 = vsub.s32 %v539, %v541
    %v543 = vrot.slane %v534, %v542
    %v544 = vlaneseq
    %v545 = vshrl.u32 %v544, 7
    %v546 = vsub.s32 %v539, %v545
    %v547 = vrot.slane %v537, %v546
    %v548 = vsel %vm407, %v547, %v543
    %vm550 = vcmask 58368
    %v551 = vsel %vm550, %v548, -inf
    %552 = vmax.xlane.f32.xlu0 %v551
    %v553 = vpop.xlane.xlu0 %552
    %v555 = vlaneseq
    %v556 = vshrl.u32 %v555, 7
    %v557 = vsub.s32 0, %v556
    %v558 = vrot.slane %v553, %v557
    %v559 = vlaneseq
    %v560 = vshrl.u32 %v559, 7
    %v561 = vsub.s32 1, %v560
    %v562 = vrot.slane %v553, %v561
    %v565 = vsub.f32 %v528, %v558
    %v566 = vsub.f32 %v529, %v562
    %v567 = vmul.f32 %v565, 1.442695
    %v568 = vpow.pop %v567
    %v569 = vmul.f32 %v566, 1.442695
    %v570 = vpow.pop %v569
    %573 = vset.pattern.permute.xlu0 0
    %574 = vperm.xlu0 %573, %v568
    %v575 = vpop.permute.xlu0 %574
    %576 = vset.pattern.permute.xlu0 0
    %577 = vperm.xlu0 %576, %v570
    %v578 = vpop.permute.xlu0 %577
    %v579 = vlaneseq
    %v580 = vshrl.u32 %v579, 7
    %v581 = vsub.s32 %v539, %v580
    %v582 = vrot.slane %v575, %v581
    %v583 = vlaneseq
    %v584 = vshrl.u32 %v583, 7
    %v585 = vsub.s32 %v539, %v584
    %v586 = vrot.slane %v578, %v585
    %v587 = vsel %vm407, %v586, %v582
    %v589 = vsel %vm550, %v587, 0.0
    %590 = vadd.xlane.f32.xlu0 %v589
    %v591 = vpop.xlane.xlu0 %590
    %v592 = vrcp.pop %v591
    %v594 = vlaneseq
    %v595 = vshrl.u32 %v594, 7
    %v596 = vsub.s32 0, %v595
    %v597 = vrot.slane %v592, %v596
    %v598 = vlaneseq
    %v599 = vshrl.u32 %v598, 7
    %v600 = vsub.s32 1, %v599
    %v601 = vrot.slane %v592, %v600
    %v604 = vmul.f32 %v568, %v597
    %v605 = vmul.f32 %v570, %v601
    %607 = vset.pattern.permute.xlu0 0
    %608 = vperm.xlu0 %607, %v604
    %v609 = vpop.permute.xlu0 %608
    %612 = vset.pattern.permute.xlu0 0
    %613 = vperm.xlu0 %612, %v605
    %v614 = vpop.permute.xlu0 %613
    %v616 = vmul.f32 %v609, %v383
    %v617 = vmul.f32 %v614, %v386
    %v618 = vsel %vm280, %v616, 0.0
    %v619 = vrot.slane %v618, 4
    %v620 = vadd.f32 %v618, %v619
    %v621 = vrot.slane %v620, 2
    %v622 = vadd.f32 %v620, %v621
    %v623 = vrot.slane %v622, 1
    %v624 = vadd.f32 %v622, %v623
    %v625 = vsel %vm280, %v617, 0.0
    %v626 = vrot.slane %v625, 4
    %v627 = vadd.f32 %v625, %v626
    %v628 = vrot.slane %v627, 2
    %v629 = vadd.f32 %v627, %v628
    %v630 = vrot.slane %v629, 1
    %v631 = vadd.f32 %v629, %v630
    %v632 = vpack.c.bf16 %v624, %v624
    %v633 = vpack.c.bf16 %v631, %v631
    %v634 = vld [vmem:[#allocation11] sm:$0xf]
    %v635 = vld [vmem:[#allocation11 + $0x4] sm:$0xf]
    %v636 = vld [vmem:[#allocation11 + $0x8] sm:$0xf]
    %v637 = vld [vmem:[#allocation11 + $0xc] sm:$0xf]
    %v638 = vld [vmem:[#allocation13] sm:$0x1]
    %v640 = vlaneseq
    %v641 = vshrl.u32 %v640, 7
    %v642 = vsub.s32 0, %v641
    %v643 = vrot.slane %v638, %v642
    %v647 = vunpack.c.l.b16 %v632
    %v648 = vunpack.c.l.b16 %v633
    %v649 = vsel %vm407, %v648, %v647
    %v650 = vpack.c.b16 %v649, %v649
    %v655 = vunpack.c.l.b16 %v634
    %v656 = vunpack.c.l.b16 %v635
    %v657 = vunpack.c.l.b16 %v636
    %v658 = vunpack.c.l.b16 %v637
    %v659 = vpack.c.b16 %v656, %v655
    %v660 = vpack.c.b16 %v658, %v657
    %v664 = vsel %vm280, %v650, 0
    %666 = vmatprep.subr.bf16.mxu0 0
    %667 = vmatpush1.bf16.msra.mxu0 0
    %668 = vmatprep.subr.bf16.mxu0 0
    %669 = vmatpush1.bf16.msra.mxu0 0
    %670 = vmatprep.subr.bf16.mxu0 0
    %671 = vmatpush1.bf16.msra.mxu0 0
    %672 = vmatprep.subr.bf16.mxu0 0
    %673 = vmatpush1.bf16.msra.mxu0 0
    %674 = vmatprep.subr.bf16.mxu0 0
    %675 = vmatpush1.bf16.msra.mxu0 0
    %676 = vmatprep.subr.bf16.mxu0 0
    %677 = vmatpush1.bf16.msra.mxu0 0
    %678 = vmatprep.subr.bf16.mxu0 0
    %679 = vmatpush1.bf16.msra.mxu0 %v660
    %680 = vmatprep.subr.bf16.mxu0 0
    %681 = vmatpush1.bf16.msra.mxu0 %v659
    %682 = vmatprep.subr.bf16.mxu0 0
    %683 = vmatpush2.bf16.msra.mxu0 0
    %684 = vmatprep.subr.bf16.mxu0 0
    %685 = vmatpush2.bf16.msra.mxu0 0
    %686 = vmatprep.subr.bf16.mxu0 0
    %687 = vmatpush2.bf16.msra.mxu0 0
    %688 = vmatprep.subr.bf16.mxu0 0
    %689 = vmatpush2.bf16.msra.mxu0 0
    %690 = vmatprep.subr.bf16.mxu0 0
    %691 = vmatpush2.bf16.msra.mxu0 0
    %692 = vmatprep.subr.bf16.mxu0 0
    %693 = vmatpush2.bf16.msra.mxu0 0
    %694 = vmatprep.subr.bf16.mxu0 0
    %695 = vmatpush2.bf16.msra.mxu0 0
    %696 = vmatprep.subr.bf16.mxu0 0
    %697 = vmatpush2.bf16.msra.mxu0 0
    %698 = vmatprep.mubr.bf16.mxu0 0
    %699 = vmatmul.mubr.bf16.gmra.mxu0 %v664
    %v700 = vpop.f32.mrf.mxu0
    %v701 = vadd.f32 %v643, %v700
    %v702 = vpop.f32.mrf.mxu0
    %v703 = vpop.f32.mrf.mxu0
    %v704 = vpop.f32.mrf.mxu0
    %705 = vdwg.mxu0
    %v707 = vrot.slane %v701, 1
    %v710 = vadd.f32 %v254, %v701
    %v711 = vadd.f32 %v255, %v707
    %v714 = vrot.slane %v711, 7
    %v715 = vsel %vm407, %v714, %v710
    %vm717 = vcmask 254976
    %v718 = vsel %vm717, %v715, 0.0
    %719 = vadd.xlane.f32.xlu0 %v718
    %v720 = vpop.xlane.xlu0 %719
    %v721 = vrcp.pop 32.0
    %v722 = vmul.f32 %v720, %v721
    %v723 = vmul.f32 %v710, %v710
    %v724 = vmul.f32 %v711, %v711
    %v727 = vrot.slane %v724, 7
    %v728 = vsel %vm407, %v727, %v723
    %v730 = vsel %vm717, %v728, 0.0
    %731 = vadd.xlane.f32.xlu0 %v730
    %v732 = vpop.xlane.xlu0 %731
    %v733 = vmul.f32 %v732, %v721
    %v734 = vmul.f32 %v722, %v722
    %v735 = vsub.f32 %v733, %v734
    %v737 = vrot.slane %v722, 1
    %v740 = vsub.f32 %v710, %v722
    %v741 = vsub.f32 %v711, %v737
    %v742 = vadd.f32 %v735, 1e-12
    %v743 = vrsqrt.pop %v742
    %v745 = vrot.slane %v743, 1
    %v748 = vmul.f32 %v740, %v743
    %v749 = vmul.f32 %v741, %v745
    %v750 = vld [vmem:[#allocation14] sm:$0x1]
    %v752 = vlaneseq
    %v753 = vshrl.u32 %v752, 7
    %v754 = vsub.s32 0, %v753
    %v755 = vrot.slane %v750, %v754
    %v757 = vmul.f32 %v748, %v755
    %v758 = vmul.f32 %v749, %v755
    %v759 = vld [vmem:[#allocation16] sm:$0x1]
    %v761 = vlaneseq
    %v762 = vshrl.u32 %v761, 7
    %v763 = vsub.s32 0, %v762
    %v764 = vrot.slane %v759, %v763
    %v766 = vadd.f32 %v757, %v764
    %v767 = vadd.f32 %v758, %v764
    %v768 = vpack.c.bf16 %v766, %v766
    %v769 = vpack.c.bf16 %v767, %v767
    %v770 = vld [vmem:[#allocation17] sm:$0xf]
    %v771 = vld [vmem:[#allocation17 + $0x4] sm:$0xf]
    %v772 = vld [vmem:[#allocation17 + $0x8] sm:$0xf]
    %v773 = vld [vmem:[#allocation17 + $0xc] sm:$0xf]
    %v774 = vld [vmem:[#allocation19] sm:$0x1]
    %v776 = vlaneseq
    %v777 = vshrl.u32 %v776, 7
    %v778 = vsub.s32 0, %v777
    %v779 = vrot.slane %v774, %v778
    %v783 = vunpack.c.l.b16 %v768
    %v784 = vunpack.c.l.b16 %v769
    %v785 = vrot.slane %v784, 7
    %v786 = vsel %vm407, %v785, %v783
    %v787 = vpack.c.b16 %v786, %v786
    %v792 = vunpack.c.l.b16 %v770
    %v793 = vunpack.c.l.b16 %v771
    %v794 = vunpack.c.l.b16 %v772
    %v795 = vunpack.c.l.b16 %v773
    %v796 = vpack.c.b16 %v793, %v792
    %v797 = vpack.c.b16 %v795, %v794
    %v801 = vsel %vm280, %v787, 0
    %803 = vmatprep.subr.bf16.mxu0 0
    %804 = vmatpush1.bf16.msra.mxu0 0
    %805 = vmatprep.subr.bf16.mxu0 0
    %806 = vmatpush1.bf16.msra.mxu0 0
    %807 = vmatprep.subr.bf16.mxu0 0
    %808 = vmatpush1.bf16.msra.mxu0 0
    %809 = vmatprep.subr.bf16.mxu0 0
    %810 = vmatpush1.bf16.msra.mxu0 0
    %811 = vmatprep.subr.bf16.mxu0 0
    %812 = vmatpush1.bf16.msra.mxu0 0
    %813 = vmatprep.subr.bf16.mxu0 0
    %814 = vmatpush1.bf16.msra.mxu0 0
    %815 = vmatprep.subr.bf16.mxu0 0
    %816 = vmatpush1.bf16.msra.mxu0 %v797
    %817 = vmatprep.subr.bf16.mxu0 0
    %818 = vmatpush1.bf16.msra.mxu0 %v796
    %819 = vmatprep.subr.bf16.mxu0 0
    %820 = vmatpush2.bf16.msra.mxu0 0
    %821 = vmatprep.subr.bf16.mxu0 0
    %822 = vmatpush2.bf16.msra.mxu0 0
    %823 = vmatprep.subr.bf16.mxu0 0
    %824 = vmatpush2.bf16.msra.mxu0 0
    %825 = vmatprep.subr.bf16.mxu0 0
    %826 = vmatpush2.bf16.msra.mxu0 0
    %827 = vmatprep.subr.bf16.mxu0 0
    %828 = vmatpush2.bf16.msra.mxu0 0
    %829 = vmatprep.subr.bf16.mxu0 0
    %830 = vmatpush2.bf16.msra.mxu0 0
    %831 = vmatprep.subr.bf16.mxu0 0
    %832 = vmatpush2.bf16.msra.mxu0 0
    %833 = vmatprep.subr.bf16.mxu0 0
    %834 = vmatpush2.bf16.msra.mxu0 0
    %835 = vmatprep.mubr.bf16.mxu0 0
    %836 = vmatmul.mubr.bf16.gmra.mxu0 %v801
    %v837 = vpop.f32.mrf.mxu0
    %v838 = vadd.f32 %v779, %v837
    %v839 = vpop.f32.mrf.mxu0
    %v840 = vpop.f32.mrf.mxu0
    %v841 = vpop.f32.mrf.mxu0
    %842 = vdwg.mxu0
    %v843 = vmul.f32 %v838, %v838
    %v844 = vmul.f32 %v838, %v843
    %v845 = vmul.f32 %v844, 0.044715
    %v846 = vadd.f32 %v838, %v845
    %v847 = vmul.f32 %v846, 0.7978846
    %v848 = vtanh.pop %v847
    %v849 = vadd.f32 %v848, 1.0
    %v850 = vmul.f32 %v849, 0.5
    %v851 = vmul.f32 %v838, %v850
    %v852 = vpack.c.bf16 %v851, %v851
    %v853 = vld [vmem:[%s14] sm:$0xf]
    %v854 = vld [vmem:[%s14 + $0x4] sm:$0xf]
    %v855 = vld [vmem:[%s14 + $0x8] sm:$0xf]
    %v856 = vld [vmem:[%s14 + $0xc] sm:$0xf]
    %v857 = vld [vmem:[%s14 + $0x10] sm:$0xf]
    %v858 = vld [vmem:[%s14 + $0x14] sm:$0xf]
    %v859 = vld [vmem:[%s14 + $0x18] sm:$0xf]
    %v860 = vld [vmem:[%s14 + $0x1c] sm:$0xf]
    %v861 = vld [vmem:[#allocation20] sm:$0x1]
    %v863 = vlaneseq
    %v864 = vshrl.u32 %v863, 7
    %v865 = vsub.s32 0, %v864
    %v866 = vrot.slane %v861, %v865
    %v876 = vunpack.c.l.b16 %v853
    %v877 = vunpack.c.l.b16 %v854
    %v878 = vunpack.c.l.b16 %v855
    %v879 = vunpack.c.l.b16 %v856
    %v880 = vunpack.c.l.b16 %v857
    %v881 = vunpack.c.l.b16 %v858
    %v882 = vunpack.c.l.b16 %v859
    %v883 = vunpack.c.l.b16 %v860
    %v884 = vpack.c.b16 %v877, %v876
    %v885 = vpack.c.b16 %v879, %v878
    %v886 = vpack.c.b16 %v881, %v880
    %v887 = vpack.c.b16 %v883, %v882
    %vm892 = vcmask 523264
    %v894 = vsel %vm892, %v852, 0
    %896 = vmatprep.subr.bf16.mxu0 0
    %897 = vmatpush1.bf16.msra.mxu0 0
    %898 = vmatprep.subr.bf16.mxu0 0
    %899 = vmatpush1.bf16.msra.mxu0 0
    %900 = vmatprep.subr.bf16.mxu0 0
    %901 = vmatpush1.bf16.msra.mxu0 0
    %902 = vmatprep.subr.bf16.mxu0 0
    %903 = vmatpush1.bf16.msra.mxu0 0
    %904 = vmatprep.subr.bf16.mxu0 0
    %905 = vmatpush1.bf16.msra.mxu0 %v887
    %906 = vmatprep.subr.bf16.mxu0 0
    %907 = vmatpush1.bf16.msra.mxu0 %v886
    %908 = vmatprep.subr.bf16.mxu0 0
    %909 = vmatpush1.bf16.msra.mxu0 %v885
    %910 = vmatprep.subr.bf16.mxu0 0
    %911 = vmatpush1.bf16.msra.mxu0 %v884
    %912 = vmatprep.subr.bf16.mxu0 0
    %913 = vmatpush2.bf16.msra.mxu0 0
    %914 = vmatprep.subr.bf16.mxu0 0
    %915 = vmatpush2.bf16.msra.mxu0 0
    %916 = vmatprep.subr.bf16.mxu0 0
    %917 = vmatpush2.bf16.msra.mxu0 0
    %918 = vmatprep.subr.bf16.mxu0 0
    %919 = vmatpush2.bf16.msra.mxu0 0
    %920 = vmatprep.subr.bf16.mxu0 0
    %921 = vmatpush2.bf16.msra.mxu0 0
    %922 = vmatprep.subr.bf16.mxu0 0
    %923 = vmatpush2.bf16.msra.mxu0 0
    %924 = vmatprep.subr.bf16.mxu0 0
    %925 = vmatpush2.bf16.msra.mxu0 0
    %926 = vmatprep.subr.bf16.mxu0 0
    %927 = vmatpush2.bf16.msra.mxu0 0
    %928 = vmatprep.mubr.bf16.mxu0 0
    %929 = vmatmul.mubr.bf16.gmra.mxu0 %v894
    %v930 = vpop.f32.mrf.mxu0
    %v931 = vadd.f32 %v866, %v930
    %v932 = vpop.f32.mrf.mxu0
    %v933 = vpop.f32.mrf.mxu0
    %v934 = vpop.f32.mrf.mxu0
    %935 = vdwg.mxu0
    %v937 = vrot.slane %v931, 1
    %v940 = vadd.f32 %v766, %v931
    %v941 = vadd.f32 %v767, %v937
    %v944 = vrot.slane %v941, 7
    %v945 = vsel %vm407, %v944, %v940
    %v947 = vsel %vm717, %v945, 0.0
    %948 = vadd.xlane.f32.xlu0 %v947
    %v949 = vpop.xlane.xlu0 %948
    %v950 = vmul.f32 %v949, %v721
    %v951 = vmul.f32 %v940, %v940
    %v952 = vmul.f32 %v941, %v941
    %v955 = vrot.slane %v952, 7
    %v956 = vsel %vm407, %v955, %v951
    %v958 = vsel %vm717, %v956, 0.0
    %959 = vadd.xlane.f32.xlu0 %v958
    %v960 = vpop.xlane.xlu0 %959
    %v961 = vmul.f32 %v960, %v721
    %v962 = vmul.f32 %v950, %v950
    %v963 = vsub.f32 %v961, %v962
    %v965 = vrot.slane %v950, 1
    %v968 = vsub.f32 %v940, %v950
    %v969 = vsub.f32 %v941, %v965
    %v970 = vadd.f32 %v963, 1e-12
    %v971 = vrsqrt.pop %v970
    %v973 = vrot.slane %v971, 1
    %v976 = vmul.f32 %v968, %v971
    %v977 = vmul.f32 %v969, %v973
    %v978 = vld [vmem:[#allocation22] sm:$0x1]
    %v980 = vlaneseq
    %v981 = vshrl.u32 %v980, 7
    %v982 = vsub.s32 0, %v981
    %v983 = vrot.slane %v978, %v982
    %v985 = vmul.f32 %v976, %v983
    %v986 = vmul.f32 %v977, %v983
    %v987 = vld [vmem:[#allocation23] sm:$0x1]
    %v989 = vlaneseq
    %v990 = vshrl.u32 %v989, 7
    %v991 = vsub.s32 0, %v990
    %v992 = vrot.slane %v987, %v991
    %v994 = vadd.f32 %v985, %v992
    %v995 = vadd.f32 %v986, %v992
    %v996 = vpack.c.bf16 %v994, %v994
    %v997 = vpack.c.bf16 %v995, %v995
    %v998 = vld [vmem:[%s18] sm:$0xf]
    %v999 = vld [vmem:[%s18 + $0x4] sm:$0xf]
    %v1000 = vld [vmem:[%s18 + $0x8] sm:$0xf]
    %v1001 = vld [vmem:[%s18 + $0xc] sm:$0xf]
    %v1002 = vld [vmem:[%s19] sm:$0x1]
    %v1004 = vlaneseq
    %v1005 = vshrl.u32 %v1004, 7
    %v1006 = vsub.s32 0, %v1005
    %v1007 = vrot.slane %v1002, %v1006
    %v1011 = vunpack.c.l.b16 %v996
    %v1012 = vunpack.c.l.b16 %v997
    %v1013 = vrot.slane %v1012, 7
    %v1014 = vsel %vm407, %v1013, %v1011
    %v1015 = vpack.c.b16 %v1014, %v1014
    %v1020 = vunpack.c.l.b16 %v998
    %v1021 = vunpack.c.l.b16 %v999
    %v1022 = vunpack.c.l.b16 %v1000
    %v1023 = vunpack.c.l.b16 %v1001
    %v1024 = vpack.c.b16 %v1021, %v1020
    %v1025 = vpack.c.b16 %v1023, %v1022
    %v1029 = vsel %vm280, %v1015, 0
    %1031 = vmatprep.subr.bf16.mxu0 0
    %1032 = vmatpush1.bf16.msra.mxu0 0
    %1033 = vmatprep.subr.bf16.mxu0 0
    %1034 = vmatpush1.bf16.msra.mxu0 0
    %1035 = vmatprep.subr.bf16.mxu0 0
    %1036 = vmatpush1.bf16.msra.mxu0 0
    %1037 = vmatprep.subr.bf16.mxu0 0
    %1038 = vmatpush1.bf16.msra.mxu0 0
    %1039 = vmatprep.subr.bf16.mxu0 0
    %1040 = vmatpush1.bf16.msra.mxu0 0
    %1041 = vmatprep.subr.bf16.mxu0 0
    %1042 = vmatpush1.bf16.msra.mxu0 0
    %1043 = vmatprep.subr.bf16.mxu0 0
    %1044 = vmatpush1.bf16.msra.mxu0 %v1025
    %1045 = vmatprep.subr.bf16.mxu0 0
    %1046 = vmatpush1.bf16.msra.mxu0 %v1024
    %1047 = vmatprep.subr.bf16.mxu0 0
    %1048 = vmatpush2.bf16.msra.mxu0 0
    %1049 = vmatprep.subr.bf16.mxu0 0
    %1050 = vmatpush2.bf16.msra.mxu0 0
    %1051 = vmatprep.subr.bf16.mxu0 0
    %1052 = vmatpush2.bf16.msra.mxu0 0
    %1053 = vmatprep.subr.bf16.mxu0 0
    %1054 = vmatpush2.bf16.msra.mxu0 0
    %1055 = vmatprep.subr.bf16.mxu0 0
    %1056 = vmatpush2.bf16.msra.mxu0 0
    %1057 = vmatprep.subr.bf16.mxu0 0
    %1058 = vmatpush2.bf16.msra.mxu0 0
    %1059 = vmatprep.subr.bf16.mxu0 0
    %1060 = vmatpush2.bf16.msra.mxu0 0
    %1061 = vmatprep.subr.bf16.mxu0 0
    %1062 = vmatpush2.bf16.msra.mxu0 0
    %1063 = vmatprep.mubr.bf16.mxu0 0
    %1064 = vmatmul.mubr.bf16.gmra.mxu0 %v1029
    %v1065 = vpop.f32.mrf.mxu0
    %v1066 = vadd.f32 %v1007, %v1065
    %v1067 = vpop.f32.mrf.mxu0
    %v1068 = vpop.f32.mrf.mxu0
    %v1069 = vpop.f32.mrf.mxu0
    %1070 = vdwg.mxu0
    %v1071 = vxor.u32 %v1066, 2147483648
    %v1072 = vmul.f32 %v1071, 1.442695
    %v1073 = vpow.pop %v1072
    %v1074 = vadd.f32 %v1073, 1.0
    %v1075 = vrcp.pop %v1074
    %v1076 = vmul.f32 1.0, %v1075
    %v1077 = vld [vmem:[#allocation25] sm:$0xff]
    %v1078 = vld [vmem:[#allocation25 + $0x8] sm:$0xff]
    %v1079 = vld [vmem:[#allocation25 + $0x10] sm:$0xff]
    %v1080 = vld [vmem:[#allocation25 + $0x18] sm:$0xff]
    %v1081 = vld [vmem:[#allocation25 + $0x20] sm:$0xff]
    %v1082 = vld [vmem:[#allocation25 + $0x28] sm:$0xff]
    %v1083 = vld [vmem:[#allocation25 + $0x30] sm:$0xff]
    %v1084 = vld [vmem:[#allocation25 + $0x38] sm:$0xff]
    %v1085 = vld [vmem:[#allocation25 + $0x40] sm:$0xff]
    %v1086 = vld [vmem:[#allocation25 + $0x48] sm:$0xff]
    %v1087 = vld [vmem:[#allocation25 + $0x50] sm:$0xff]
    %v1088 = vld [vmem:[#allocation25 + $0x58] sm:$0xff]
    %v1089 = vld [vmem:[#allocation25 + $0x60] sm:$0xff]
    %v1090 = vld [vmem:[#allocation25 + $0x68] sm:$0xff]
    %v1091 = vld [vmem:[#allocation25 + $0x70] sm:$0xff]
    %v1092 = vld [vmem:[#allocation25 + $0x78] sm:$0xff]
    %1093 = vmatprep.subr.mxu0 0.0
    %1094 = vmatpush1.msra.mxu0 %v1092
    %1095 = vmatprep.subr.mxu0 0.0
    %1096 = vmatpush1.msra.mxu0 %v1091
    %1097 = vmatprep.subr.mxu0 0.0
    %1098 = vmatpush1.msra.mxu0 %v1090
    %1099 = vmatprep.subr.mxu0 0.0
    %1100 = vmatpush1.msra.mxu0 %v1089
    %1101 = vmatprep.subr.mxu0 0.0
    %1102 = vmatpush1.msra.mxu0 %v1088
    %1103 = vmatprep.subr.mxu0 0.0
    %1104 = vmatpush1.msra.mxu0 %v1087
    %1105 = vmatprep.subr.mxu0 0.0
    %1106 = vmatpush1.msra.mxu0 %v1086
    %1107 = vmatprep.subr.mxu0 0.0
    %1108 = vmatpush1.msra.mxu0 %v1085
    %1109 = vmatprep.subr.mxu0 0.0
    %1110 = vmatpush1.msra.mxu0 %v1084
    %1111 = vmatprep.subr.mxu0 0.0
    %1112 = vmatpush1.msra.mxu0 %v1083
    %1113 = vmatprep.subr.mxu0 0.0
    %1114 = vmatpush1.msra.mxu0 %v1082
    %1115 = vmatprep.subr.mxu0 0.0
    %1116 = vmatpush1.msra.mxu0 %v1081
    %1117 = vmatprep.subr.mxu0 0.0
    %1118 = vmatpush1.msra.mxu0 %v1080
    %1119 = vmatprep.subr.mxu0 0.0
    %1120 = vmatpush1.msra.mxu0 %v1079
    %1121 = vmatprep.subr.mxu0 0.0
    %1122 = vmatpush1.msra.mxu0 %v1078
    %1123 = vmatprep.subr.mxu0 0.0
    %1124 = vmatpush1.msra.mxu0 %v1077
    %1125 = vmatprep.subr.mxu0 0.0
    %1126 = vmatpush2.msra.mxu0 0.0
    %1127 = vmatprep.subr.mxu0 0.0
    %1128 = vmatpush2.msra.mxu0 0.0
    %1129 = vmatprep.subr.mxu0 0.0
    %1130 = vmatpush2.msra.mxu0 0.0
    %1131 = vmatprep.subr.mxu0 0.0
    %1132 = vmatpush2.msra.mxu0 0.0
    %1133 = vmatprep.subr.mxu0 0.0
    %1134 = vmatpush2.msra.mxu0 0.0
    %1135 = vmatprep.subr.mxu0 0.0
    %1136 = vmatpush2.msra.mxu0 0.0
    %1137 = vmatprep.subr.mxu0 0.0
    %1138 = vmatpush2.msra.mxu0 0.0
    %1139 = vmatprep.subr.mxu0 0.0
    %1140 = vmatpush2.msra.mxu0 0.0
    %1141 = vmatprep.subr.mxu0 0.0
    %1142 = vmatpush2.msra.mxu0 0.0
    %1143 = vmatprep.subr.mxu0 0.0
    %1144 = vmatpush2.msra.mxu0 0.0
    %1145 = vmatprep.subr.mxu0 0.0
    %1146 = vmatpush2.msra.mxu0 0.0
    %1147 = vmatprep.subr.mxu0 0.0
    %1148 = vmatpush2.msra.mxu0 0.0
    %1149 = vmatprep.subr.mxu0 0.0
    %1150 = vmatpush2.msra.mxu0 0.0
    %1151 = vmatprep.subr.mxu0 0.0
    %1152 = vmatpush2.msra.mxu0 0.0
    %1153 = vmatprep.subr.mxu0 0.0
    %1154 = vmatpush2.msra.mxu0 0.0
    %1155 = vmatprep.subr.mxu0 0.0
    %1156 = vmatpush2.msra.mxu0 0.0
    %1157 = vmatprep.mubr.f32.mxu0 0.0
    %1158 = vmatmul.mubr.f32.gmra.mxu0 %v1076
    %v1159 = vpop.f32.mrf.mxu0
    %v1160 = vadd.f32 0.0, %v1159
    %v1161 = vpop.f32.mrf.mxu0
    %1162 = vdwg.mxu0
    %v1163 = vld [vmem:[%s21] sm:$0x1]
    %vm1164 = vcmp.eq.f32.partialorder %v1163, 1.0
    %vm1165 = vcmp.eq.f32.partialorder %v1163, 2.0
    %vm1166 = vcmp.ge.f32.partialorder %v1160, 0.5
    %v1167 = vsel %vm1165, 1, 0
    %v1168 = vlaneseq
    %v1169 = vshrl.u32 %v1168, 7
    %v1170 = vsub.s32 0, %v1169
    %v1171 = vrot.slane %v1167, %v1170
    %vm1172 = vcmp.eq.s32.totalorder %v1171, 1
    %vm1173 = vmand %vm1172, %vm1166
    %v1174 = vsel %vm1164, 1, 0
    %v1175 = vlaneseq
    %v1176 = vshrl.u32 %v1175, 7
    %v1177 = vsub.s32 0, %v1176
    %v1178 = vrot.slane %v1174, %v1177
    %vm1179 = vcmp.eq.s32.totalorder %v1178, 1
    %vm1180 = vmor %vm1179, %vm1173
    %v1181 = vsel %vm1180, %v1076, 0.0
    %1182 = vst [vmem:[#allocation26] sm:$0x3] %v1181
    // Predicated region
    $region150: #{tpu_custom_call.1} parent=1 // pred_check
      _
    $region151: #{tpu_custom_call.1} parent=1 // pred_check_branch
      %1184 = sbr.rel (0) target = $region153
    $region152: #{tpu_custom_call.1} parent=1 // pred_region
      %s1186 = ssub.s32 32, 32
      %1187 = vsyncadd [#allocation4], %s1186
      %s1189 = sshll.u32 [#allocation26], 4
      %s1190 = int_to_ptr.vmem [resolvable:$true] %s1189
      %1192 = dma.vmem_to_hbm [thread:$0]  %s1190, 32, %s22, [#allocation4]
    $region153: #{tpu_custom_call.1} parent=1 // pred_fallthru
      _
    // Predicated region
    $region154: #{tpu_custom_call.1} parent=1 // pred_check
      _
    $region155: #{tpu_custom_call.1} parent=1 // pred_check_branch
      %1194 = sbr.rel (0) target = $region157
    $region156: #{tpu_custom_call.1} parent=1 // pred_region
      %1195 = dma.done [#allocation4], 32
    $region157: #{tpu_custom_call.1} parent=1 // pred_fallthru
      _
    %1196 = vsyncpa [#allocation3], 1
    %1197 = vsyncpa [#allocation6], 1
    %1198 = vsyncpa [#allocation9], 1
    %1199 = vsyncpa [#allocation12], 1
    %1200 = vsyncpa [#allocation15], 1
    %1201 = vsyncpa [#allocation18], 1
    %1202 = vsyncpa [#allocation21], 1
    %1203 = vsyncpa [#allocation24], 1
    %1204 = vsyncpa [#allocation4], 1

</llo_original>
